<compile_context>
chip_gen: v7x
topology: tpu7x:2x2x1
jax: 0.10.0
libtpu: 0.0.40
codegen_flags: <defaults>
</compile_context>

<pallas_src>
import functools

import jax
import jax.numpy as jnp
from jax.experimental import pallas as pl
from jax.experimental.pallas import tpu as pltpu

EPS = 1e-5  # nn.GroupNorm default


# --------------------------------------------------------------------------
# Fused kernel: one program per batch element.
# --------------------------------------------------------------------------
def _resnet_block_kernel(x_ref, shift_ref, w1_ref, w2_ref, wr_ref,
                         v1_ref, v2_ref, br_ref, pool_ref, bcast_ref, ss_ref,
                         out_ref, *, inv_n):
    f32 = jnp.float32
    bf16 = jnp.bfloat16

    x = x_ref[0]            # (H, W*Cin)   f32, lane-dense activation
    sdn = shift_ref[0]      # (H, H)       f32  (row r -> r+1, row 0 := 0)
    sup = shift_ref[1]      # (H, H)       f32  (row r -> r-1, last row := 0)
    pool = pool_ref[...]    # (W*Cout, G)  f32  one-hot lane -> group
    bcast = bcast_ref[...]  # (G, W*Cout)  f32  group -> lane broadcast

    def conv3x3(a, w_ref):
        # a: (H, W*Cin') f32 ; w_ref: (3, W*Cin', W*Cout) bf16 banded weights.
        # H padding via zero-row shift matmuls, W padding is inside the band.
        a_dn = jnp.dot(sdn, a, preferred_element_type=f32)   # rows shifted down
        a_up = jnp.dot(sup, a, preferred_element_type=f32)   # rows shifted up
        acc = jnp.dot(a_dn.astype(bf16), w1 := w_ref[0], preferred_element_type=f32)
        acc = acc + jnp.dot(a.astype(bf16), w_ref[1], preferred_element_type=f32)
        acc = acc + jnp.dot(a_up.astype(bf16), w_ref[2], preferred_element_type=f32)
        return acc                                           # (H, W*Cout) f32

    def group_norm(a, gamma, beta):
        # Two-pass (centered) mean / biased variance per group, f32 stats.
        colsum = jnp.sum(a, axis=0, keepdims=True)                        # (1, W*Cout)
        mean_g = jnp.dot(colsum, pool, preferred_element_type=f32) * inv_n
        mean = jnp.dot(mean_g, bcast, preferred_element_type=f32)         # (1, W*Cout)
        cent = a - mean
        sqsum = jnp.sum(cent * cent, axis=0, keepdims=True)
        var_g = jnp.dot(sqsum, pool, preferred_element_type=f32) * inv_n
        var = jnp.dot(var_g, bcast, preferred_element_type=f32)
        return cent * jax.lax.rsqrt(var + EPS) * gamma + beta

    def silu(v):
        return v * jax.nn.sigmoid(v)

    v1 = v1_ref[...]        # (3, W*Cout): [conv bias, gamma, beta], lane-tiled
    v2 = v2_ref[...]
    ss = ss_ref[0]          # (2, W*Cout): [scale+1, shift] for this batch elem

    # ---- Block 1: conv3x3 + GroupNorm + (scale, shift) + SiLU ------------
    h = conv3x3(x, w1_ref) + v1[0:1, :]
    h = group_norm(h, v1[1:2, :], v1[2:3, :])
    h = h * ss[0:1, :] + ss[1:2, :]
    h = silu(h)

    # ---- Block 2: conv3x3 + GroupNorm + SiLU (no scale/shift) ------------
    h = conv3x3(h, w2_ref) + v2[0:1, :]
    h = group_norm(h, v2[1:2, :], v2[2:3, :])
    h = silu(h)

    # ---- Residual 1x1 conv, fused ----------------------------------------
    res = jnp.dot(x.astype(bf16), wr_ref[...], preferred_element_type=f32)
    res = res + br_ref[...]

    out_ref[...] = (h + res).reshape(out_ref.shape)   # lane-dense (1, H, W*Cout)


# --------------------------------------------------------------------------
# Host-side weight packing (glue, runs once in XLA).
# --------------------------------------------------------------------------
def _banded_conv3x3_weights(w_hwio, width):
    """(3, 3, Cin, Cout) HWIO -> (3, W*Cin, W*Cout) per-row-tap block-banded
    matrices: the kx taps and the zero padding along W are folded in."""
    _, _, cin, cout = w_hwio.shape
    xin = jnp.arange(width)[:, None]
    xout = jnp.arange(width)[None, :]
    kx = xin - xout + 1                                   # (W_in, W_out)
    valid = ((kx >= 0) & (kx <= 2)).astype(w_hwio.dtype)
    kx = jnp.clip(kx, 0, 2)
    bands = []
    for ky in range(3):
        wk = w_hwio[ky][kx] * valid[:, :, None, None]     # (W, W, Cin, Cout)
        wk = jnp.transpose(wk, (0, 2, 1, 3)).reshape(width * cin, width * cout)
        bands.append(wk)
    return jnp.stack(bands, axis=0)


def _banded_1x1_weights(wr, width):
    """(Cin, Cout) -> (W*Cin, W*Cout) block-diagonal 1x1-conv matrix."""
    cin, cout = wr.shape
    eye = jnp.eye(width, dtype=wr.dtype)
    m = eye[:, None, :, None] * wr[None, :, None, :]      # (W, Cin, W, Cout)
    return m.reshape(width * cin, width * cout)


# --------------------------------------------------------------------------
# ResnetBlock forward (NCHW in / NCHW out, like the PyTorch module)
# --------------------------------------------------------------------------
def resnet_block_forward(x_nchw, time_emb, p, groups=8):
    B, Cin, H, W = x_nchw.shape
    Cout = p["w1"].shape[-1]
    G = groups
    cg = Cout // G
    NC = W * Cout

    # Tiny time-embedding MLP in plain XLA (not worth a kernel launch).
    emb = jax.nn.silu(time_emb) @ p["mlp_w"] + p["mlp_b"]          # (B, 2*Cout)
    scale, shift = emb[:, :Cout], emb[:, Cout:]
    ss = jnp.stack([jnp.tile(scale + 1.0, (1, W)),
                    jnp.tile(shift, (1, W))], axis=1)              # (B, 2, W*Cout)

    # Lane-dense activation layout: (B, H, W*Cin).
    x2d = jnp.transpose(x_nchw, (0, 2, 3, 1)).reshape(B, H, W * Cin)

    # Weight packing (glue).
    w1b = _banded_conv3x3_weights(p["w1"], W).astype(jnp.bfloat16)
    w2b = _banded_conv3x3_weights(p["w2"], W).astype(jnp.bfloat16)
    wrb = _banded_1x1_weights(p["wr"], W).astype(jnp.bfloat16)
    v1 = jnp.stack([jnp.tile(p["b1"], W), jnp.tile(p["g1"], W), jnp.tile(p["beta1"], W)])
    v2 = jnp.stack([jnp.tile(p["b2"], W), jnp.tile(p["g2"], W), jnp.tile(p["beta2"], W)])
    brv = jnp.tile(p["br"], W).reshape(1, NC)
    shiftm = jnp.stack([jnp.eye(H, k=-1, dtype=jnp.float32),
                        jnp.eye(H, k=1, dtype=jnp.float32)], axis=0)
    grp = (jnp.arange(NC) % Cout) // cg
    pool = (grp[:, None] == jnp.arange(G)[None, :]).astype(jnp.float32)   # (W*Cout, G)
    bcast = pool.T                                                        # (G, W*Cout)

    kernel = functools.partial(_resnet_block_kernel, inv_n=1.0 / float(H * W * cg))
    out2d = pl.pallas_call(
        kernel,
        out_shape=jax.ShapeDtypeStruct((B, H, NC), jnp.float32),
        grid=(B,),
        in_specs=[
            pl.BlockSpec((1, H, W * Cin), lambda b: (b, 0, 0)),   # x (per batch)
            pl.BlockSpec((2, H, H), lambda b: (0, 0, 0)),         # row-shift matrices
            pl.BlockSpec((3, W * Cin, NC), lambda b: (0, 0, 0)),  # conv1 banded w (bf16)
            pl.BlockSpec((3, NC, NC), lambda b: (0, 0, 0)),       # conv2 banded w (bf16)
            pl.BlockSpec((W * Cin, NC), lambda b: (0, 0)),        # 1x1 residual w (bf16)
            pl.BlockSpec((3, NC), lambda b: (0, 0)),              # b1 / g1 / beta1
            pl.BlockSpec((3, NC), lambda b: (0, 0)),              # b2 / g2 / beta2
            pl.BlockSpec((1, NC), lambda b: (0, 0)),              # residual bias
            pl.BlockSpec((NC, G), lambda b: (0, 0)),              # lane -> group one-hot
            pl.BlockSpec((G, NC), lambda b: (0, 0)),              # group -> lane bcast
            pl.BlockSpec((1, 2, NC), lambda b: (b, 0, 0)),        # per-batch scale+1/shift
        ],
        out_specs=pl.BlockSpec((1, H, NC), lambda b: (b, 0, 0)),
        compiler_params=pltpu.CompilerParams(
            dimension_semantics=("parallel",)),                   # batch axis -> megacore
    )(x2d, shiftm, w1b, w2b, wrb, v1, v2, brv, pool, bcast, ss)

    out = out2d.reshape(B, H, W, Cout)
    return jnp.transpose(out, (0, 3, 1, 2))                       # NHWC -> NCHW


# --------------------------------------------------------------------------
# Pure-JAX f32 reference (sanity check)
# --------------------------------------------------------------------------
def _ref_forward(x_nchw, t, p, groups):
    x = jnp.transpose(x_nchw, (0, 2, 3, 1))

    def conv3(x, w, b):
        y = jax.lax.conv_general_dilated(
            x, w, (1, 1), "SAME", dimension_numbers=("NHWC", "HWIO", "NHWC"))
        return y + b

    def gn(x, gamma, beta, G):
        B, H, W, C = x.shape
        xg = x.reshape(B, H, W, G, C // G)
        mean = xg.mean(axis=(1, 2, 4), keepdims=True)
        var = xg.var(axis=(1, 2, 4), keepdims=True)
        xn = ((xg - mean) / jnp.sqrt(var + EPS)).reshape(B, H, W, C)
        return xn * gamma + beta

    silu = lambda v: v * jax.nn.sigmoid(v)

    Cout = p["w1"].shape[-1]
    emb = silu(t) @ p["mlp_w"] + p["mlp_b"]
    scale, shift = emb[:, :Cout], emb[:, Cout:]
    h = conv3(x, p["w1"], p["b1"])
    h = gn(h, p["g1"], p["beta1"], groups)
    h = h * (scale[:, None, None, :] + 1.0) + shift[:, None, None, :]
    h = silu(h)
    h = conv3(h, p["w2"], p["b2"])
    h = gn(h, p["g2"], p["beta2"], groups)
    h = silu(h)
    res = jnp.einsum("bhwc,cd->bhwd", x, p["wr"]) + p["br"]
    return jnp.transpose(h + res, (0, 3, 1, 2))


if __name__ == "__main__":
    # Shapes implied by ResnetBlock(dim=4, dim_out=8, time_emb_dim=16, groups=8)
    B, Cin, Cout, H, W, T, G = 2, 4, 8, 16, 16, 16, 8

    key = jax.random.PRNGKey(0)
    ks = jax.random.split(key, 14)
    params = {
        "mlp_w": jax.random.normal(ks[0], (T, 2 * Cout), jnp.float32) * 0.2,
        "mlp_b": jax.random.normal(ks[1], (2 * Cout,), jnp.float32) * 0.1,
        "w1": jax.random.normal(ks[2], (3, 3, Cin, Cout), jnp.float32) * 0.2,
        "b1": jax.random.normal(ks[3], (Cout,), jnp.float32) * 0.1,
        "g1": 1.0 + jax.random.normal(ks[4], (Cout,), jnp.float32) * 0.05,
        "beta1": jax.random.normal(ks[5], (Cout,), jnp.float32) * 0.05,
        "w2": jax.random.normal(ks[6], (3, 3, Cout, Cout), jnp.float32) * 0.2,
        "b2": jax.random.normal(ks[7], (Cout,), jnp.float32) * 0.1,
        "g2": 1.0 + jax.random.normal(ks[8], (Cout,), jnp.float32) * 0.05,
        "beta2": jax.random.normal(ks[9], (Cout,), jnp.float32) * 0.05,
        "wr": jax.random.normal(ks[10], (Cin, Cout), jnp.float32) * 0.2,  # 1x1 res conv
        "br": jax.random.normal(ks[11], (Cout,), jnp.float32) * 0.1,
    }
    x = jax.random.normal(ks[12], (B, Cin, H, W), jnp.float32)        # NCHW like PyTorch
    time_emb = jax.random.normal(ks[13], (B, T), jnp.float32)

    out = resnet_block_forward(x, time_emb, params, groups=G)
    out = jax.block_until_ready(out)

    ref = _ref_forward(x, time_emb, params, G)
    assert out.shape == (B, Cout, H, W)
    # Tolerance covers bf16 MXU operands (f32 accumulation / f32 GroupNorm stats).
    assert jnp.allclose(out, ref, rtol=3e-2, atol=3e-2), "mismatch vs reference"

    print("KERNEL_OK")
</pallas_src>

<mosaic_0001>
module attributes {stable_mosaic.version = 11 : i64} {
  func.func @_resnet_block_kernel(%arg0: i32, %arg1: memref<1x16x64xf32, #tpu.memory_space<vmem>>, %arg2: memref<2x16x16xf32, #tpu.memory_space<vmem>>, %arg3: memref<3x64x128xbf16, #tpu.memory_space<vmem>>, %arg4: memref<3x128x128xbf16, #tpu.memory_space<vmem>>, %arg5: memref<64x128xbf16, #tpu.memory_space<vmem>>, %arg6: memref<3x128xf32, #tpu.memory_space<vmem>>, %arg7: memref<3x128xf32, #tpu.memory_space<vmem>>, %arg8: memref<1x128xf32, #tpu.memory_space<vmem>>, %arg9: memref<128x8xf32, #tpu.memory_space<vmem>>, %arg10: memref<8x128xf32, #tpu.memory_space<vmem>>, %arg11: memref<1x2x128xf32, #tpu.memory_space<vmem>>, %arg12: memref<1x16x128xf32, #tpu.memory_space<vmem>>) attributes {dimension_semantics = [#tpu.dimension_semantics<parallel>], iteration_bounds = array<i64: 2>, scalar_prefetch = 0 : i64, scratch_operands = 0 : i64, tpu.core_type = #tpu.core_type<tc>, window_params = [{transform_indices = @transform_0, window_bounds = array<i64: 1, 16, 64>}, {pipeline_mode = #tpu.pipeline_mode<synchronous>, transform_indices = @transform_1, window_bounds = array<i64: 2, 16, 16>}, {pipeline_mode = #tpu.pipeline_mode<synchronous>, transform_indices = @transform_2, window_bounds = array<i64: 3, 64, 128>}, {pipeline_mode = #tpu.pipeline_mode<synchronous>, transform_indices = @transform_3, window_bounds = array<i64: 3, 128, 128>}, {pipeline_mode = #tpu.pipeline_mode<synchronous>, transform_indices = @transform_4, window_bounds = array<i64: 64, 128>}, {pipeline_mode = #tpu.pipeline_mode<synchronous>, transform_indices = @transform_5, window_bounds = array<i64: 3, 128>}, {pipeline_mode = #tpu.pipeline_mode<synchronous>, transform_indices = @transform_6, window_bounds = array<i64: 3, 128>}, {pipeline_mode = #tpu.pipeline_mode<synchronous>, transform_indices = @transform_7, window_bounds = array<i64: 1, 128>}, {pipeline_mode = #tpu.pipeline_mode<synchronous>, transform_indices = @transform_8, window_bounds = array<i64: 128, 8>}, {pipeline_mode = #tpu.pipeline_mode<synchronous>, transform_indices = @transform_9, window_bounds = array<i64: 8, 128>}, {transform_indices = @transform_10, window_bounds = array<i64: 1, 2, 128>}, {transform_indices = @transform_11, window_bounds = array<i64: 1, 16, 128>}]} {
    %c0 = arith.constant 0 : index
    %c0_0 = arith.constant 0 : index
    %c0_1 = arith.constant 0 : index
    %0 = vector.load %arg1[%c0, %c0_0, %c0_1] : memref<1x16x64xf32, #tpu.memory_space<vmem>>, vector<1x16x64xf32>
    %1 = vector.shape_cast %0 : vector<1x16x64xf32> to vector<16x64xf32>
    %c0_2 = arith.constant 0 : index
    %c0_3 = arith.constant 0 : index
    %c0_4 = arith.constant 0 : index
    %2 = vector.load %arg2[%c0_2, %c0_3, %c0_4] : memref<2x16x16xf32, #tpu.memory_space<vmem>>, vector<1x16x16xf32>
    %3 = vector.shape_cast %2 : vector<1x16x16xf32> to vector<16x16xf32>
    %c1 = arith.constant 1 : index
    %c0_5 = arith.constant 0 : index
    %c0_6 = arith.constant 0 : index
    %4 = vector.load %arg2[%c1, %c0_5, %c0_6] : memref<2x16x16xf32, #tpu.memory_space<vmem>>, vector<1x16x16xf32>
    %5 = vector.shape_cast %4 : vector<1x16x16xf32> to vector<16x16xf32>
    %c0_7 = arith.constant 0 : index
    %c0_8 = arith.constant 0 : index
    %6 = vector.load %arg9[%c0_7, %c0_8] : memref<128x8xf32, #tpu.memory_space<vmem>>, vector<128x8xf32>
    %c0_9 = arith.constant 0 : index
    %c0_10 = arith.constant 0 : index
    %7 = vector.load %arg10[%c0_9, %c0_10] : memref<8x128xf32, #tpu.memory_space<vmem>>, vector<8x128xf32>
    %c0_11 = arith.constant 0 : index
    %c0_12 = arith.constant 0 : index
    %8 = vector.load %arg6[%c0_11, %c0_12] : memref<3x128xf32, #tpu.memory_space<vmem>>, vector<3x128xf32>
    %c0_13 = arith.constant 0 : index
    %c0_14 = arith.constant 0 : index
    %9 = vector.load %arg7[%c0_13, %c0_14] : memref<3x128xf32, #tpu.memory_space<vmem>>, vector<3x128xf32>
    %c0_15 = arith.constant 0 : index
    %c0_16 = arith.constant 0 : index
    %c0_17 = arith.constant 0 : index
    %10 = vector.load %arg11[%c0_15, %c0_16, %c0_17] : memref<1x2x128xf32, #tpu.memory_space<vmem>>, vector<1x2x128xf32>
    %11 = vector.shape_cast %10 : vector<1x2x128xf32> to vector<2x128xf32>
    %cst = arith.constant dense<0.000000e+00> : vector<16x64xf32>
    %12 = tpu.matmul %3, %1, %cst {dimension_numbers = #tpu.dot_dimension_numbers<[1], [0], [0], [1], [0, 0, 1, 1], [], []>} : vector<16x16xf32>, vector<16x64xf32>, vector<16x64xf32> -> vector<16x64xf32>
    %cst_18 = arith.constant dense<0.000000e+00> : vector<16x64xf32>
    %13 = tpu.matmul %5, %1, %cst_18 {dimension_numbers = #tpu.dot_dimension_numbers<[1], [0], [0], [1], [0, 0, 1, 1], [], []>} : vector<16x16xf32>, vector<16x64xf32>, vector<16x64xf32> -> vector<16x64xf32>
    %14 = arith.truncf %12 : vector<16x64xf32> to vector<16x64xbf16>
    %c0_19 = arith.constant 0 : index
    %c0_20 = arith.constant 0 : index
    %c0_21 = arith.constant 0 : index
    %15 = vector.load %arg3[%c0_19, %c0_20, %c0_21] : memref<3x64x128xbf16, #tpu.memory_space<vmem>>, vector<1x64x128xbf16>
    %16 = vector.shape_cast %15 : vector<1x64x128xbf16> to vector<64x128xbf16>
    %cst_22 = arith.constant dense<0.000000e+00> : vector<16x128xf32>
    %17 = tpu.matmul %14, %16, %cst_22 {dimension_numbers = #tpu.dot_dimension_numbers<[1], [0], [0], [1], [0, 0, 1, 1], [], []>} : vector<16x64xbf16>, vector<64x128xbf16>, vector<16x128xf32> -> vector<16x128xf32>
    %18 = arith.truncf %1 : vector<16x64xf32> to vector<16x64xbf16>
    %c1_23 = arith.constant 1 : index
    %c0_24 = arith.constant 0 : index
    %c0_25 = arith.constant 0 : index
    %19 = vector.load %arg3[%c1_23, %c0_24, %c0_25] : memref<3x64x128xbf16, #tpu.memory_space<vmem>>, vector<1x64x128xbf16>
    %20 = vector.shape_cast %19 : vector<1x64x128xbf16> to vector<64x128xbf16>
    %cst_26 = arith.constant dense<0.000000e+00> : vector<16x128xf32>
    %21 = tpu.matmul %18, %20, %cst_26 {dimension_numbers = #tpu.dot_dimension_numbers<[1], [0], [0], [1], [0, 0, 1, 1], [], []>} : vector<16x64xbf16>, vector<64x128xbf16>, vector<16x128xf32> -> vector<16x128xf32>
    %22 = arith.addf %17, %21 : vector<16x128xf32>
    %23 = arith.truncf %13 : vector<16x64xf32> to vector<16x64xbf16>
    %c2 = arith.constant 2 : index
    %c0_27 = arith.constant 0 : index
    %c0_28 = arith.constant 0 : index
    %24 = vector.load %arg3[%c2, %c0_27, %c0_28] : memref<3x64x128xbf16, #tpu.memory_space<vmem>>, vector<1x64x128xbf16>
    %25 = vector.shape_cast %24 : vector<1x64x128xbf16> to vector<64x128xbf16>
    %cst_29 = arith.constant dense<0.000000e+00> : vector<16x128xf32>
    %26 = tpu.matmul %23, %25, %cst_29 {dimension_numbers = #tpu.dot_dimension_numbers<[1], [0], [0], [1], [0, 0, 1, 1], [], []>} : vector<16x64xbf16>, vector<64x128xbf16>, vector<16x128xf32> -> vector<16x128xf32>
    %27 = arith.addf %22, %26 : vector<16x128xf32>
    %28 = vector.extract_strided_slice %8 {offsets = [0, 0], sizes = [1, 128], strides = [1, 1]} : vector<3x128xf32> to vector<1x128xf32>
    %29 = vector.broadcast %28 : vector<1x128xf32> to vector<16x128xf32>
    %30 = arith.addf %27, %29 : vector<16x128xf32>
    %31 = vector.extract_strided_slice %8 {offsets = [1, 0], sizes = [1, 128], strides = [1, 1]} : vector<3x128xf32> to vector<1x128xf32>
    %32 = vector.extract_strided_slice %8 {offsets = [2, 0], sizes = [1, 128], strides = [1, 1]} : vector<3x128xf32> to vector<1x128xf32>
    %cst_30 = arith.constant dense<0.000000e+00> : vector<128xf32>
    %33 = vector.multi_reduction <add>, %30, %cst_30 [0] : vector<16x128xf32> to vector<128xf32>
    %34 = vector.shape_cast %33 : vector<128xf32> to vector<1x128xf32>
    %cst_31 = arith.constant dense<0.000000e+00> : vector<1x8xf32>
    %35 = tpu.matmul %34, %6, %cst_31 {dimension_numbers = #tpu.dot_dimension_numbers<[1], [0], [0], [1], [0, 0, 1, 1], [], []>} : vector<1x128xf32>, vector<128x8xf32>, vector<1x8xf32> -> vector<1x8xf32>
    %cst_32 = arith.constant 3.906250e-03 : f32
    %36 = vector.broadcast %cst_32 : f32 to vector<1x8xf32>
    %37 = arith.mulf %35, %36 : vector<1x8xf32>
    %cst_33 = arith.constant dense<0.000000e+00> : vector<1x128xf32>
    %38 = tpu.matmul %37, %7, %cst_33 {dimension_numbers = #tpu.dot_dimension_numbers<[1], [0], [0], [1], [0, 0, 1, 1], [], []>} : vector<1x8xf32>, vector<8x128xf32>, vector<1x128xf32> -> vector<1x128xf32>
    %39 = vector.broadcast %38 : vector<1x128xf32> to vector<16x128xf32>
    %40 = arith.subf %30, %39 : vector<16x128xf32>
    %41 = arith.mulf %40, %40 : vector<16x128xf32>
    %cst_34 = arith.constant dense<0.000000e+00> : vector<128xf32>
    %42 = vector.multi_reduction <add>, %41, %cst_34 [0] : vector<16x128xf32> to vector<128xf32>
    %43 = vector.shape_cast %42 : vector<128xf32> to vector<1x128xf32>
    %cst_35 = arith.constant dense<0.000000e+00> : vector<1x8xf32>
    %44 = tpu.matmul %43, %6, %cst_35 {dimension_numbers = #tpu.dot_dimension_numbers<[1], [0], [0], [1], [0, 0, 1, 1], [], []>} : vector<1x128xf32>, vector<128x8xf32>, vector<1x8xf32> -> vector<1x8xf32>
    %cst_36 = arith.constant 3.906250e-03 : f32
    %45 = vector.broadcast %cst_36 : f32 to vector<1x8xf32>
    %46 = arith.mulf %44, %45 : vector<1x8xf32>
    %cst_37 = arith.constant dense<0.000000e+00> : vector<1x128xf32>
    %47 = tpu.matmul %46, %7, %cst_37 {dimension_numbers = #tpu.dot_dimension_numbers<[1], [0], [0], [1], [0, 0, 1, 1], [], []>} : vector<1x8xf32>, vector<8x128xf32>, vector<1x128xf32> -> vector<1x128xf32>
    %cst_38 = arith.constant 9.99999974E-6 : f32
    %48 = vector.broadcast %cst_38 : f32 to vector<1x128xf32>
    %49 = arith.addf %47, %48 : vector<1x128xf32>
    %50 = math.rsqrt %49 : vector<1x128xf32>
    %51 = vector.broadcast %50 : vector<1x128xf32> to vector<16x128xf32>
    %52 = arith.mulf %40, %51 : vector<16x128xf32>
    %53 = vector.broadcast %31 : vector<1x128xf32> to vector<16x128xf32>
    %54 = arith.mulf %52, %53 : vector<16x128xf32>
    %55 = vector.broadcast %32 : vector<1x128xf32> to vector<16x128xf32>
    %56 = arith.addf %54, %55 : vector<16x128xf32>
    %57 = vector.extract_strided_slice %11 {offsets = [0, 0], sizes = [1, 128], strides = [1, 1]} : vector<2x128xf32> to vector<1x128xf32>
    %58 = vector.broadcast %57 : vector<1x128xf32> to vector<16x128xf32>
    %59 = arith.mulf %56, %58 : vector<16x128xf32>
    %60 = vector.extract_strided_slice %11 {offsets = [1, 0], sizes = [1, 128], strides = [1, 1]} : vector<2x128xf32> to vector<1x128xf32>
    %61 = vector.broadcast %60 : vector<1x128xf32> to vector<16x128xf32>
    %62 = arith.addf %59, %61 : vector<16x128xf32>
    %63 = arith.negf %62 : vector<16x128xf32>
    %64 = math.exp %63 : vector<16x128xf32>
    %cst_39 = arith.constant 1.000000e+00 : f32
    %65 = vector.broadcast %cst_39 : f32 to vector<16x128xf32>
    %66 = arith.addf %65, %64 : vector<16x128xf32>
    %67 = arith.divf %65, %66 : vector<16x128xf32>
    %68 = arith.mulf %62, %67 : vector<16x128xf32>
    %cst_40 = arith.constant dense<0.000000e+00> : vector<16x128xf32>
    %69 = tpu.matmul %3, %68, %cst_40 {dimension_numbers = #tpu.dot_dimension_numbers<[1], [0], [0], [1], [0, 0, 1, 1], [], []>} : vector<16x16xf32>, vector<16x128xf32>, vector<16x128xf32> -> vector<16x128xf32>
    %cst_41 = arith.constant dense<0.000000e+00> : vector<16x128xf32>
    %70 = tpu.matmul %5, %68, %cst_41 {dimension_numbers = #tpu.dot_dimension_numbers<[1], [0], [0], [1], [0, 0, 1, 1], [], []>} : vector<16x16xf32>, vector<16x128xf32>, vector<16x128xf32> -> vector<16x128xf32>
    %71 = arith.truncf %69 : vector<16x128xf32> to vector<16x128xbf16>
    %c0_42 = arith.constant 0 : index
    %c0_43 = arith.constant 0 : index
    %c0_44 = arith.constant 0 : index
    %72 = vector.load %arg4[%c0_42, %c0_43, %c0_44] : memref<3x128x128xbf16, #tpu.memory_space<vmem>>, vector<1x128x128xbf16>
    %73 = vector.shape_cast %72 : vector<1x128x128xbf16> to vector<128x128xbf16>
    %cst_45 = arith.constant dense<0.000000e+00> : vector<16x128xf32>
    %74 = tpu.matmul %71, %73, %cst_45 {dimension_numbers = #tpu.dot_dimension_numbers<[1], [0], [0], [1], [0, 0, 1, 1], [], []>} : vector<16x128xbf16>, vector<128x128xbf16>, vector<16x128xf32> -> vector<16x128xf32>
    %75 = arith.truncf %68 : vector<16x128xf32> to vector<16x128xbf16>
    %c1_46 = arith.constant 1 : index
    %c0_47 = arith.constant 0 : index
    %c0_48 = arith.constant 0 : index
    %76 = vector.load %arg4[%c1_46, %c0_47, %c0_48] : memref<3x128x128xbf16, #tpu.memory_space<vmem>>, vector<1x128x128xbf16>
    %77 = vector.shape_cast %76 : vector<1x128x128xbf16> to vector<128x128xbf16>
    %cst_49 = arith.constant dense<0.000000e+00> : vector<16x128xf32>
    %78 = tpu.matmul %75, %77, %cst_49 {dimension_numbers = #tpu.dot_dimension_numbers<[1], [0], [0], [1], [0, 0, 1, 1], [], []>} : vector<16x128xbf16>, vector<128x128xbf16>, vector<16x128xf32> -> vector<16x128xf32>
    %79 = arith.addf %74, %78 : vector<16x128xf32>
    %80 = arith.truncf %70 : vector<16x128xf32> to vector<16x128xbf16>
    %c2_50 = arith.constant 2 : index
    %c0_51 = arith.constant 0 : index
    %c0_52 = arith.constant 0 : index
    %81 = vector.load %arg4[%c2_50, %c0_51, %c0_52] : memref<3x128x128xbf16, #tpu.memory_space<vmem>>, vector<1x128x128xbf16>
    %82 = vector.shape_cast %81 : vector<1x128x128xbf16> to vector<128x128xbf16>
    %cst_53 = arith.constant dense<0.000000e+00> : vector<16x128xf32>
    %83 = tpu.matmul %80, %82, %cst_53 {dimension_numbers = #tpu.dot_dimension_numbers<[1], [0], [0], [1], [0, 0, 1, 1], [], []>} : vector<16x128xbf16>, vector<128x128xbf16>, vector<16x128xf32> -> vector<16x128xf32>
    %84 = arith.addf %79, %83 : vector<16x128xf32>
    %85 = vector.extract_strided_slice %9 {offsets = [0, 0], sizes = [1, 128], strides = [1, 1]} : vector<3x128xf32> to vector<1x128xf32>
    %86 = vector.broadcast %85 : vector<1x128xf32> to vector<16x128xf32>
    %87 = arith.addf %84, %86 : vector<16x128xf32>
    %88 = vector.extract_strided_slice %9 {offsets = [1, 0], sizes = [1, 128], strides = [1, 1]} : vector<3x128xf32> to vector<1x128xf32>
    %89 = vector.extract_strided_slice %9 {offsets = [2, 0], sizes = [1, 128], strides = [1, 1]} : vector<3x128xf32> to vector<1x128xf32>
    %cst_54 = arith.constant dense<0.000000e+00> : vector<128xf32>
    %90 = vector.multi_reduction <add>, %87, %cst_54 [0] : vector<16x128xf32> to vector<128xf32>
    %91 = vector.shape_cast %90 : vector<128xf32> to vector<1x128xf32>
    %cst_55 = arith.constant dense<0.000000e+00> : vector<1x8xf32>
    %92 = tpu.matmul %91, %6, %cst_55 {dimension_numbers = #tpu.dot_dimension_numbers<[1], [0], [0], [1], [0, 0, 1, 1], [], []>} : vector<1x128xf32>, vector<128x8xf32>, vector<1x8xf32> -> vector<1x8xf32>
    %cst_56 = arith.constant 3.906250e-03 : f32
    %93 = vector.broadcast %cst_56 : f32 to vector<1x8xf32>
    %94 = arith.mulf %92, %93 : vector<1x8xf32>
    %cst_57 = arith.constant dense<0.000000e+00> : vector<1x128xf32>
    %95 = tpu.matmul %94, %7, %cst_57 {dimension_numbers = #tpu.dot_dimension_numbers<[1], [0], [0], [1], [0, 0, 1, 1], [], []>} : vector<1x8xf32>, vector<8x128xf32>, vector<1x128xf32> -> vector<1x128xf32>
    %96 = vector.broadcast %95 : vector<1x128xf32> to vector<16x128xf32>
    %97 = arith.subf %87, %96 : vector<16x128xf32>
    %98 = arith.mulf %97, %97 : vector<16x128xf32>
    %cst_58 = arith.constant dense<0.000000e+00> : vector<128xf32>
    %99 = vector.multi_reduction <add>, %98, %cst_58 [0] : vector<16x128xf32> to vector<128xf32>
    %100 = vector.shape_cast %99 : vector<128xf32> to vector<1x128xf32>
    %cst_59 = arith.constant dense<0.000000e+00> : vector<1x8xf32>
    %101 = tpu.matmul %100, %6, %cst_59 {dimension_numbers = #tpu.dot_dimension_numbers<[1], [0], [0], [1], [0, 0, 1, 1], [], []>} : vector<1x128xf32>, vector<128x8xf32>, vector<1x8xf32> -> vector<1x8xf32>
    %cst_60 = arith.constant 3.906250e-03 : f32
    %102 = vector.broadcast %cst_60 : f32 to vector<1x8xf32>
    %103 = arith.mulf %101, %102 : vector<1x8xf32>
    %cst_61 = arith.constant dense<0.000000e+00> : vector<1x128xf32>
    %104 = tpu.matmul %103, %7, %cst_61 {dimension_numbers = #tpu.dot_dimension_numbers<[1], [0], [0], [1], [0, 0, 1, 1], [], []>} : vector<1x8xf32>, vector<8x128xf32>, vector<1x128xf32> -> vector<1x128xf32>
    %cst_62 = arith.constant 9.99999974E-6 : f32
    %105 = vector.broadcast %cst_62 : f32 to vector<1x128xf32>
    %106 = arith.addf %104, %105 : vector<1x128xf32>
    %107 = math.rsqrt %106 : vector<1x128xf32>
    %108 = vector.broadcast %107 : vector<1x128xf32> to vector<16x128xf32>
    %109 = arith.mulf %97, %108 : vector<16x128xf32>
    %110 = vector.broadcast %88 : vector<1x128xf32> to vector<16x128xf32>
    %111 = arith.mulf %109, %110 : vector<16x128xf32>
    %112 = vector.broadcast %89 : vector<1x128xf32> to vector<16x128xf32>
    %113 = arith.addf %111, %112 : vector<16x128xf32>
    %114 = arith.negf %113 : vector<16x128xf32>
    %115 = math.exp %114 : vector<16x128xf32>
    %cst_63 = arith.constant 1.000000e+00 : f32
    %116 = vector.broadcast %cst_63 : f32 to vector<16x128xf32>
    %117 = arith.addf %116, %115 : vector<16x128xf32>
    %118 = arith.divf %116, %117 : vector<16x128xf32>
    %119 = arith.mulf %113, %118 : vector<16x128xf32>
    %120 = arith.truncf %1 : vector<16x64xf32> to vector<16x64xbf16>
    %c0_64 = arith.constant 0 : index
    %c0_65 = arith.constant 0 : index
    %121 = vector.load %arg5[%c0_64, %c0_65] : memref<64x128xbf16, #tpu.memory_space<vmem>>, vector<64x128xbf16>
    %cst_66 = arith.constant dense<0.000000e+00> : vector<16x128xf32>
    %122 = tpu.matmul %120, %121, %cst_66 {dimension_numbers = #tpu.dot_dimension_numbers<[1], [0], [0], [1], [0, 0, 1, 1], [], []>} : vector<16x64xbf16>, vector<64x128xbf16>, vector<16x128xf32> -> vector<16x128xf32>
    %c0_67 = arith.constant 0 : index
    %c0_68 = arith.constant 0 : index
    %123 = vector.load %arg8[%c0_67, %c0_68] : memref<1x128xf32, #tpu.memory_space<vmem>>, vector<1x128xf32>
    %124 = vector.broadcast %123 : vector<1x128xf32> to vector<16x128xf32>
    %125 = arith.addf %122, %124 : vector<16x128xf32>
    %126 = arith.addf %119, %125 : vector<16x128xf32>
    %127 = vector.shape_cast %126 : vector<16x128xf32> to vector<1x16x128xf32>
    %c0_69 = arith.constant 0 : index
    %c0_70 = arith.constant 0 : index
    %c0_71 = arith.constant 0 : index
    %128 = vector.load %arg12[%c0_69, %c0_70, %c0_71] : memref<1x16x128xf32, #tpu.memory_space<vmem>>, vector<1x16x128xf32>
    tpu.vector_store %arg12[%c0_69, %c0_70, %c0_71], %127 {strides = array<i32>} : memref<1x16x128xf32, #tpu.memory_space<vmem>>, vector<1x16x128xf32>,
    return
  }
  func.func @transform_0(%arg0: i32) -> (i32, i32, i32) {
    %c0_i32 = arith.constant 0 : i32
    %c0_i32_0 = arith.constant 0 : i32
    %c0_i32_1 = arith.constant 0 : i32
    return %arg0, %c0_i32, %c0_i32_0 : i32, i32, i32
  }
  func.func @transform_1(%arg0: i32) -> (i32, i32, i32) {
    %c0_i32 = arith.constant 0 : i32
    %c0_i32_0 = arith.constant 0 : i32
    %c0_i32_1 = arith.constant 0 : i32
    %c0_i32_2 = arith.constant 0 : i32
    return %c0_i32, %c0_i32_0, %c0_i32_1 : i32, i32, i32
  }
  func.func @transform_2(%arg0: i32) -> (i32, i32, i32) {
    %c0_i32 = arith.constant 0 : i32
    %c0_i32_0 = arith.constant 0 : i32
    %c0_i32_1 = arith.constant 0 : i32
    %c0_i32_2 = arith.constant 0 : i32
    return %c0_i32, %c0_i32_0, %c0_i32_1 : i32, i32, i32
  }
  func.func @transform_3(%arg0: i32) -> (i32, i32, i32) {
    %c0_i32 = arith.constant 0 : i32
    %c0_i32_0 = arith.constant 0 : i32
    %c0_i32_1 = arith.constant 0 : i32
    %c0_i32_2 = arith.constant 0 : i32
    return %c0_i32, %c0_i32_0, %c0_i32_1 : i32, i32, i32
  }
  func.func @transform_4(%arg0: i32) -> (i32, i32) {
    %c0_i32 = arith.constant 0 : i32
    %c0_i32_0 = arith.constant 0 : i32
    %c0_i32_1 = arith.constant 0 : i32
    return %c0_i32, %c0_i32_0 : i32, i32
  }
  func.func @transform_5(%arg0: i32) -> (i32, i32) {
    %c0_i32 = arith.constant 0 : i32
    %c0_i32_0 = arith.constant 0 : i32
    %c0_i32_1 = arith.constant 0 : i32
    return %c0_i32, %c0_i32_0 : i32, i32
  }
  func.func @transform_6(%arg0: i32) -> (i32, i32) {
    %c0_i32 = arith.constant 0 : i32
    %c0_i32_0 = arith.constant 0 : i32
    %c0_i32_1 = arith.constant 0 : i32
    return %c0_i32, %c0_i32_0 : i32, i32
  }
  func.func @transform_7(%arg0: i32) -> (i32, i32) {
    %c0_i32 = arith.constant 0 : i32
    %c0_i32_0 = arith.constant 0 : i32
    %c0_i32_1 = arith.constant 0 : i32
    return %c0_i32, %c0_i32_0 : i32, i32
  }
  func.func @transform_8(%arg0: i32) -> (i32, i32) {
    %c0_i32 = arith.constant 0 : i32
    %c0_i32_0 = arith.constant 0 : i32
    %c0_i32_1 = arith.constant 0 : i32
    return %c0_i32, %c0_i32_0 : i32, i32
  }
  func.func @transform_9(%arg0: i32) -> (i32, i32) {
    %c0_i32 = arith.constant 0 : i32
    %c0_i32_0 = arith.constant 0 : i32
    %c0_i32_1 = arith.constant 0 : i32
    return %c0_i32, %c0_i32_0 : i32, i32
  }
  func.func @transform_10(%arg0: i32) -> (i32, i32, i32) {
    %c0_i32 = arith.constant 0 : i32
    %c0_i32_0 = arith.constant 0 : i32
    %c0_i32_1 = arith.constant 0 : i32
    return %arg0, %c0_i32, %c0_i32_0 : i32, i32, i32
  }
  func.func @transform_11(%arg0: i32) -> (i32, i32, i32) {
    %c0_i32 = arith.constant 0 : i32
    %c0_i32_0 = arith.constant 0 : i32
    %c0_i32_1 = arith.constant 0 : i32
    return %arg0, %c0_i32, %c0_i32_0 : i32, i32, i32
  }
}

</mosaic_0001>

<llo_original>
// kernel: tpu_custom_call.1
$region0: #{tpu_custom_call.1}
  #allocation0 [shape = 'u32[]', space=smem, size = 0x4, offset = 0x4, fixed_abs, tag = 'smem constant byte address 0x4 - core index']
  #allocation1 [shape = 'u32[144,128]{1,0:T(1,128)}', space=vmem, size = 0x12000, scoped, tag = 'internal scratch']
  %s0 = inlined_call_operand.vmem [shape: f32[2,16,64], index: 0, kind: input, shape index: {}]
  %s1 = inlined_call_operand.hbm [shape: f32[2,16,16], index: 1, kind: input, shape index: {}]
  %s2 = inlined_call_operand.vmem [shape: bf16[3,64,128], index: 2, kind: input, shape index: {}]
  %s3 = inlined_call_operand.hbm [shape: bf16[3,128,128], index: 3, kind: input, shape index: {}]
  %s4 = inlined_call_operand.hbm [shape: bf16[64,128], index: 4, kind: input, shape index: {}]
  %s5 = inlined_call_operand.vmem [shape: f32[3,128], index: 5, kind: input, shape index: {}]
  %s6 = inlined_call_operand.vmem [shape: f32[3,128], index: 6, kind: input, shape index: {}]
  %s7 = inlined_call_operand.vmem [shape: f32[1,128], index: 7, kind: input, shape index: {}]
  %s8 = inlined_call_operand.vmem [shape: f32[128,8], index: 8, kind: input, shape index: {}]
  %s9 = inlined_call_operand.vmem [shape: f32[8,128], index: 9, kind: input, shape index: {}]
  %s10 = inlined_call_operand.vmem [shape: f32[2,2,128], index: 10, kind: input, shape index: {}]
  %s11 = inlined_call_operand.hbm [shape: f32[2,16,128], index: 11, kind: output, shape index: {}]
  %s12 = sld [smem:[#allocation0]]
  $region89: #{tpu_custom_call.1} parent=0
    _
  %s14 = ssub.s32 1, %s12
  %s15 = scalar_select 0, %s14, %s12
  $region1: #{tpu_custom_call.1} parent=0
    #allocation2 [shape = 'u8[16384]{0}', space=vmem, size = 0x4000, scoped, tag = 'input window, operand 1, single buffered']
    #allocation3 [shape = 's32[2]{0}', space=sflag, size = 0x8, scoped, tag = 'scoped memory for tpu_custom_call.1']
    #allocation4 [shape = 's32[2]{0}', space=sflag, size = 0x8, scoped, tag = 'scoped memory for tpu_custom_call.1']
    #allocation5 [shape = 'u8[98304]{0}', space=vmem, size = 0x18000, scoped, tag = 'input window, operand 3, single buffered']
    #allocation6 [shape = 's32[1]{0}', space=sflag, size = 0x4, scoped, tag = 'scoped memory for tpu_custom_call.1']
    #allocation7 [shape = 'u8[16384]{0}', space=vmem, size = 0x4000, scoped, tag = 'input window, operand 4, single buffered']
    #allocation8 [shape = 'u8[16384]{0}', space=vmem, size = 0x4000, scoped, tag = 'output window, operand 0']
    %16 = vsyncpa [#allocation3], 0
    %17 = vsyncpa [#allocation6], 0
    %18 = vsyncpa [#allocation4], 0
    %s19 = scalar_lea.sflag [#allocation4], 1
    %20 = vsyncpa %s19, 0
    loop: start=0, step=1, limit=4
    $region2: #{tpu_custom_call.1} parent=1 // loop_pre_header
      _
    $region3: #{tpu_custom_call.1} parent=1 // loop_header
      %s22 = sphi 0, %s26
      %p23 = scmp.ge.s32.totalorder %s22, 4
      %s32 = sphi 0, %s34
      %s35 = sphi 0, %s32
      %s36 = sphi 0, %s35
      %s52 = sphi 0, %s36
      %s56 = sphi 0, %s56
      %s58 = sphi 0, %s56
      %s59 = sphi 0, %s58
      %s73 = sphi 0, %s59
      %s77 = sphi 0, %s77
      %s79 = sphi 0, %s77
      %s80 = sphi 0, %s79
      %s94 = sphi 0, %s80
      %s98 = sphi 0, %s98
      %s100 = sphi 0, %s98
      %s101 = sphi 0, %s100
      %s115 = sphi 0, %s101
      %s119 = sphi 0, %s119
      %s121 = sphi 0, %s119
      %s122 = sphi 0, %s121
      %s136 = sphi 0, %s122
      %s140 = sphi 0, %s140
      %s142 = sphi 0, %s140
      %s143 = sphi 0, %s142
      %s157 = sphi 0, %s143
      %s161 = sphi 0, %s161
      %s163 = sphi 0, %s161
      %s164 = sphi 0, %s163
      %s178 = sphi 0, %s164
      %s182 = sphi 0, %s182
      %s184 = sphi 0, %s182
      %s185 = sphi 0, %s184
      %s199 = sphi 0, %s185
      %s203 = sphi 0, %s203
      %s205 = sphi 0, %s203
      %s206 = sphi 0, %s205
      %s220 = sphi 0, %s206
      %s224 = sphi 0, %s224
      %s226 = sphi 0, %s224
      %s227 = sphi 0, %s226
      %s241 = sphi 0, %s227
      %s247 = sphi 0, %s249
      %s250 = sphi 0, %s247
      %s251 = sphi 0, %s250
      %s267 = sphi 0, %s251
      %s273 = sphi 0, %s275
      %s276 = sphi 0, %s273
      %s277 = sphi 0, %s276
      %s293 = sphi 0, %s277
    $region4: #{tpu_custom_call.1} parent=1 // loop_header_branch
      %25 = sbr.rel (%p23) target = $region8
    $region5: #{tpu_custom_call.1} parent=1 // loop_body
      %s27 = ssub.s32 %s22, 1
      %s28 = ssub.s32 %s22, 2
      %s29 = sadd.s32 %s22, 1
      %s30 = ssub.s32 %s22, %s29
      %p31 = scmp.eq.s32.totalorder %s30, 0
      %s33 = sadd.s32 %s32, 1
      %s34 = scalar_select %p31, %s32, %s33
      %p37 = pneg %p31
      %p38 = scmp.eq.s32.totalorder %s22, 1
      %p39 = por %p37, %p38
      %p40 = scmp.ne.s32.totalorder %s32, %s35
      %p41 = scmp.eq.s32.totalorder %s22, 0
      %p42 = por %p40, %p41
      %p43 = scmp.ne.s32.totalorder %s32, %s35
      %p44 = scmp.eq.s32.totalorder %s27, 1
      %p45 = por %p43, %p44
      %p46 = scmp.ne.s32.totalorder %s35, %s36
      %p47 = scmp.eq.s32.totalorder %s27, 0
      %p48 = por %p46, %p47
      %p49 = scmp.ne.s32.totalorder %s35, %s36
      %p50 = scmp.eq.s32.totalorder %s28, 1
      %p51 = por %p49, %p50
      %p53 = scmp.ne.s32.totalorder %s36, %s52
      %p54 = scmp.eq.s32.totalorder %s28, 0
      %p55 = por %p53, %p54
      %s57 = sadd.s32 %s56, 1
      %p60 = scmp.eq.s32.totalorder %s22, 1
      %p61 = scmp.ne.s32.totalorder %s56, %s58
      %p62 = scmp.eq.s32.totalorder %s22, 0
      %p63 = por %p61, %p62
      %p64 = scmp.ne.s32.totalorder %s56, %s58
      %p65 = scmp.eq.s32.totalorder %s27, 1
      %p66 = por %p64, %p65
      %p67 = scmp.ne.s32.totalorder %s58, %s59
      %p68 = scmp.eq.s32.totalorder %s27, 0
      %p69 = por %p67, %p68
      %p70 = scmp.ne.s32.totalorder %s58, %s59
      %p71 = scmp.eq.s32.totalorder %s28, 1
      %p72 = por %p70, %p71
      %p74 = scmp.ne.s32.totalorder %s59, %s73
      %p75 = scmp.eq.s32.totalorder %s28, 0
      %p76 = por %p74, %p75
      %s78 = sadd.s32 %s77, 1
      %p81 = scmp.eq.s32.totalorder %s22, 1
      %p82 = scmp.ne.s32.totalorder %s77, %s79
      %p83 = scmp.eq.s32.totalorder %s22, 0
      %p84 = por %p82, %p83
      %p85 = scmp.ne.s32.totalorder %s77, %s79
      %p86 = scmp.eq.s32.totalorder %s27, 1
      %p87 = por %p85, %p86
      %p88 = scmp.ne.s32.totalorder %s79, %s80
      %p89 = scmp.eq.s32.totalorder %s27, 0
      %p90 = por %p88, %p89
      %p91 = scmp.ne.s32.totalorder %s79, %s80
      %p92 = scmp.eq.s32.totalorder %s28, 1
      %p93 = por %p91, %p92
      %p95 = scmp.ne.s32.totalorder %s80, %s94
      %p96 = scmp.eq.s32.totalorder %s28, 0
      %p97 = por %p95, %p96
      %s99 = sadd.s32 %s98, 1
      %p102 = scmp.eq.s32.totalorder %s22, 1
      %p103 = scmp.ne.s32.totalorder %s98, %s100
      %p104 = scmp.eq.s32.totalorder %s22, 0
      %p105 = por %p103, %p104
      %p106 = scmp.ne.s32.totalorder %s98, %s100
      %p107 = scmp.eq.s32.totalorder %s27, 1
      %p108 = por %p106, %p107
      %p109 = scmp.ne.s32.totalorder %s100, %s101
      %p110 = scmp.eq.s32.totalorder %s27, 0
      %p111 = por %p109, %p110
      %p112 = scmp.ne.s32.totalorder %s100, %s101
      %p113 = scmp.eq.s32.totalorder %s28, 1
      %p114 = por %p112, %p113
      %p116 = scmp.ne.s32.totalorder %s101, %s115
      %p117 = scmp.eq.s32.totalorder %s28, 0
      %p118 = por %p116, %p117
      %s120 = sadd.s32 %s119, 1
      %p123 = scmp.eq.s32.totalorder %s22, 1
      %p124 = scmp.ne.s32.totalorder %s119, %s121
      %p125 = scmp.eq.s32.totalorder %s22, 0
      %p126 = por %p124, %p125
      %p127 = scmp.ne.s32.totalorder %s119, %s121
      %p128 = scmp.eq.s32.totalorder %s27, 1
      %p129 = por %p127, %p128
      %p130 = scmp.ne.s32.totalorder %s121, %s122
      %p131 = scmp.eq.s32.totalorder %s27, 0
      %p132 = por %p130, %p131
      %p133 = scmp.ne.s32.totalorder %s121, %s122
      %p134 = scmp.eq.s32.totalorder %s28, 1
      %p135 = por %p133, %p134
      %p137 = scmp.ne.s32.totalorder %s122, %s136
      %p138 = scmp.eq.s32.totalorder %s28, 0
      %p139 = por %p137, %p138
      %s141 = sadd.s32 %s140, 1
      %p144 = scmp.eq.s32.totalorder %s22, 1
      %p145 = scmp.ne.s32.totalorder %s140, %s142
      %p146 = scmp.eq.s32.totalorder %s22, 0
      %p147 = por %p145, %p146
      %p148 = scmp.ne.s32.totalorder %s140, %s142
      %p149 = scmp.eq.s32.totalorder %s27, 1
      %p150 = por %p148, %p149
      %p151 = scmp.ne.s32.totalorder %s142, %s143
      %p152 = scmp.eq.s32.totalorder %s27, 0
      %p153 = por %p151, %p152
      %p154 = scmp.ne.s32.totalorder %s142, %s143
      %p155 = scmp.eq.s32.totalorder %s28, 1
      %p156 = por %p154, %p155
      %p158 = scmp.ne.s32.totalorder %s143, %s157
      %p159 = scmp.eq.s32.totalorder %s28, 0
      %p160 = por %p158, %p159
      %s162 = sadd.s32 %s161, 1
      %p165 = scmp.eq.s32.totalorder %s22, 1
      %p166 = scmp.ne.s32.totalorder %s161, %s163
      %p167 = scmp.eq.s32.totalorder %s22, 0
      %p168 = por %p166, %p167
      %p169 = scmp.ne.s32.totalorder %s161, %s163
      %p170 = scmp.eq.s32.totalorder %s27, 1
      %p171 = por %p169, %p170
      %p172 = scmp.ne.s32.totalorder %s163, %s164
      %p173 = scmp.eq.s32.totalorder %s27, 0
      %p174 = por %p172, %p173
      %p175 = scmp.ne.s32.totalorder %s163, %s164
      %p176 = scmp.eq.s32.totalorder %s28, 1
      %p177 = por %p175, %p176
      %p179 = scmp.ne.s32.totalorder %s164, %s178
      %p180 = scmp.eq.s32.totalorder %s28, 0
      %p181 = por %p179, %p180
      %s183 = sadd.s32 %s182, 1
      %p186 = scmp.eq.s32.totalorder %s22, 1
      %p187 = scmp.ne.s32.totalorder %s182, %s184
      %p188 = scmp.eq.s32.totalorder %s22, 0
      %p189 = por %p187, %p188
      %p190 = scmp.ne.s32.totalorder %s182, %s184
      %p191 = scmp.eq.s32.totalorder %s27, 1
      %p192 = por %p190, %p191
      %p193 = scmp.ne.s32.totalorder %s184, %s185
      %p194 = scmp.eq.s32.totalorder %s27, 0
      %p195 = por %p193, %p194
      %p196 = scmp.ne.s32.totalorder %s184, %s185
      %p197 = scmp.eq.s32.totalorder %s28, 1
      %p198 = por %p196, %p197
      %p200 = scmp.ne.s32.totalorder %s185, %s199
      %p201 = scmp.eq.s32.totalorder %s28, 0
      %p202 = por %p200, %p201
      %s204 = sadd.s32 %s203, 1
      %p207 = scmp.eq.s32.totalorder %s22, 1
      %p208 = scmp.ne.s32.totalorder %s203, %s205
      %p209 = scmp.eq.s32.totalorder %s22, 0
      %p210 = por %p208, %p209
      %p211 = scmp.ne.s32.totalorder %s203, %s205
      %p212 = scmp.eq.s32.totalorder %s27, 1
      %p213 = por %p211, %p212
      %p214 = scmp.ne.s32.totalorder %s205, %s206
      %p215 = scmp.eq.s32.totalorder %s27, 0
      %p216 = por %p214, %p215
      %p217 = scmp.ne.s32.totalorder %s205, %s206
      %p218 = scmp.eq.s32.totalorder %s28, 1
      %p219 = por %p217, %p218
      %p221 = scmp.ne.s32.totalorder %s206, %s220
      %p222 = scmp.eq.s32.totalorder %s28, 0
      %p223 = por %p221, %p222
      %s225 = sadd.s32 %s224, 1
      %p228 = scmp.eq.s32.totalorder %s22, 1
      %p229 = scmp.ne.s32.totalorder %s224, %s226
      %p230 = scmp.eq.s32.totalorder %s22, 0
      %p231 = por %p229, %p230
      %p232 = scmp.ne.s32.totalorder %s224, %s226
      %p233 = scmp.eq.s32.totalorder %s27, 1
      %p234 = por %p232, %p233
      %p235 = scmp.ne.s32.totalorder %s226, %s227
      %p236 = scmp.eq.s32.totalorder %s27, 0
      %p237 = por %p235, %p236
      %p238 = scmp.ne.s32.totalorder %s226, %s227
      %p239 = scmp.eq.s32.totalorder %s28, 1
      %p240 = por %p238, %p239
      %p242 = scmp.ne.s32.totalorder %s227, %s241
      %p243 = scmp.eq.s32.totalorder %s28, 0
      %p244 = por %p242, %p243
      %s245 = ssub.s32 %s22, %s29
      %p246 = scmp.eq.s32.totalorder %s245, 0
      %s248 = sadd.s32 %s247, 1
      %s249 = scalar_select %p246, %s247, %s248
      %p252 = pneg %p246
      %p253 = scmp.eq.s32.totalorder %s22, 1
      %p254 = por %p252, %p253
      %p255 = scmp.ne.s32.totalorder %s247, %s250
      %p256 = scmp.eq.s32.totalorder %s22, 0
      %p257 = por %p255, %p256
      %p258 = scmp.ne.s32.totalorder %s247, %s250
      %p259 = scmp.eq.s32.totalorder %s27, 1
      %p260 = por %p258, %p259
      %p261 = scmp.ne.s32.totalorder %s250, %s251
      %p262 = scmp.eq.s32.totalorder %s27, 0
      %p263 = por %p261, %p262
      %p264 = scmp.ne.s32.totalorder %s250, %s251
      %p265 = scmp.eq.s32.totalorder %s28, 1
      %p266 = por %p264, %p265
      %p268 = scmp.ne.s32.totalorder %s251, %s267
      %p269 = scmp.eq.s32.totalorder %s28, 0
      %p270 = por %p268, %p269
      %s271 = ssub.s32 %s22, %s29
      %p272 = scmp.eq.s32.totalorder %s271, 0
      %s274 = sadd.s32 %s273, 1
      %s275 = scalar_select %p272, %s273, %s274
      %p278 = pneg %p272
      %p279 = scmp.eq.s32.totalorder %s22, 1
      %p280 = por %p278, %p279
      %p281 = scmp.ne.s32.totalorder %s273, %s276
      %p282 = scmp.eq.s32.totalorder %s22, 0
      %p283 = por %p281, %p282
      %p284 = scmp.ne.s32.totalorder %s273, %s276
      %p285 = scmp.eq.s32.totalorder %s27, 1
      %p286 = por %p284, %p285
      %p287 = scmp.ne.s32.totalorder %s276, %s277
      %p288 = scmp.eq.s32.totalorder %s27, 0
      %p289 = por %p287, %p288
      %p290 = scmp.ne.s32.totalorder %s276, %s277
      %p291 = scmp.eq.s32.totalorder %s28, 1
      %p292 = por %p290, %p291
      %p294 = scmp.ne.s32.totalorder %s277, %s293
      %p295 = scmp.eq.s32.totalorder %s28, 0
      %p296 = por %p294, %p295
      %p297 = scmp.le.s32.totalorder 1, %s22
      %p298 = scmp.lt.s32.totalorder %s22, 3
      %p299 = pnand %p297, %p298
      %p300 = pneg %p299
      // Predicated region
      $region9: #{tpu_custom_call.1} parent=5 // pred_check
        _
      $region10: #{tpu_custom_call.1} parent=5 // pred_check_branch
        %302 = sbr.rel (%p299) target = $region12
      $region11: #{tpu_custom_call.1} parent=5 // pred_region
        %s303 = ssub.s32 %s22, 1
        // Predicated region
        $region13: #{tpu_custom_call.1} parent=11 // pred_check
          %p304 = pneg %p69
        $region14: #{tpu_custom_call.1} parent=11 // pred_check_branch
          %306 = sbr.rel (%p304) target = $region16
        $region15: #{tpu_custom_call.1} parent=11 // pred_region
          %s308 = ssub.s32 512, 512
          %309 = vsyncadd [#allocation3], %s308
          %s310 = sshll.u32 [#allocation2], 4
          %s311 = int_to_ptr.vmem [resolvable:$true] %s310
          %316 = dma.hbm_to_vmem [thread:$0]  %s1, 512, %s311, [#allocation3], 128, 128, 8
        $region16: #{tpu_custom_call.1} parent=11 // pred_fallthru
          _
        // Predicated region
        $region17: #{tpu_custom_call.1} parent=11 // pred_check
          %p317 = pneg %p90
        $region18: #{tpu_custom_call.1} parent=11 // pred_check_branch
          %319 = sbr.rel (%p317) target = $region20
        $region19: #{tpu_custom_call.1} parent=11 // pred_region
          _
        $region20: #{tpu_custom_call.1} parent=11 // pred_fallthru
          _
        // Predicated region
        $region21: #{tpu_custom_call.1} parent=11 // pred_check
          %p320 = pneg %p111
        $region22: #{tpu_custom_call.1} parent=11 // pred_check_branch
          %322 = sbr.rel (%p320) target = $region24
        $region23: #{tpu_custom_call.1} parent=11 // pred_region
          %s324 = ssub.s32 3072, 3072
          %325 = vsyncadd [#allocation6], %s324
          %s326 = sshll.u32 [#allocation5], 4
          %s327 = int_to_ptr.vmem [resolvable:$true] %s326
          %332 = dma.hbm_to_vmem [thread:$0]  %s3, 3072, %s327, [#allocation6], 64, 64, 4
        $region24: #{tpu_custom_call.1} parent=11 // pred_fallthru
          _
        // Predicated region
        $region25: #{tpu_custom_call.1} parent=11 // pred_check
          %p333 = pneg %p132
        $region26: #{tpu_custom_call.1} parent=11 // pred_check_branch
          %335 = sbr.rel (%p333) target = $region28
        $region27: #{tpu_custom_call.1} parent=11 // pred_region
          %s337 = ssub.s32 512, 512
          %338 = vsyncadd [#allocation6], %s337
          %s339 = sshll.u32 [#allocation7], 4
          %s340 = int_to_ptr.vmem [resolvable:$true] %s339
          %345 = dma.hbm_to_vmem [thread:$0]  %s4, 512, %s340, [#allocation6], 64, 64, 4
        $region28: #{tpu_custom_call.1} parent=11 // pred_fallthru
          _
        // Predicated region
        $region29: #{tpu_custom_call.1} parent=11 // pred_check
          %p346 = pneg %p153
        $region30: #{tpu_custom_call.1} parent=11 // pred_check_branch
          %348 = sbr.rel (%p346) target = $region32
        $region31: #{tpu_custom_call.1} parent=11 // pred_region
          _
        $region32: #{tpu_custom_call.1} parent=11 // pred_fallthru
          _
        // Predicated region
        $region33: #{tpu_custom_call.1} parent=11 // pred_check
          %p349 = pneg %p174
        $region34: #{tpu_custom_call.1} parent=11 // pred_check_branch
          %351 = sbr.rel (%p349) target = $region36
        $region35: #{tpu_custom_call.1} parent=11 // pred_region
          _
        $region36: #{tpu_custom_call.1} parent=11 // pred_fallthru
          _
        // Predicated region
        $region37: #{tpu_custom_call.1} parent=11 // pred_check
          %p352 = pneg %p195
        $region38: #{tpu_custom_call.1} parent=11 // pred_check_branch
          %354 = sbr.rel (%p352) target = $region40
        $region39: #{tpu_custom_call.1} parent=11 // pred_region
          _
        $region40: #{tpu_custom_call.1} parent=11 // pred_fallthru
          _
        // Predicated region
        $region41: #{tpu_custom_call.1} parent=11 // pred_check
          %p355 = pneg %p216
        $region42: #{tpu_custom_call.1} parent=11 // pred_check_branch
          %357 = sbr.rel (%p355) target = $region44
        $region43: #{tpu_custom_call.1} parent=11 // pred_region
          _
        $region44: #{tpu_custom_call.1} parent=11 // pred_fallthru
          _
        // Predicated region
        $region45: #{tpu_custom_call.1} parent=11 // pred_check
          %p358 = pneg %p237
        $region46: #{tpu_custom_call.1} parent=11 // pred_check_branch
          %360 = sbr.rel (%p358) target = $region48
        $region47: #{tpu_custom_call.1} parent=11 // pred_region
          _
        $region48: #{tpu_custom_call.1} parent=11 // pred_fallthru
          _
      $region12: #{tpu_custom_call.1} parent=5 // pred_fallthru
        _
      %p361 = scmp.lt.s32.totalorder %s22, 2
      // Predicated region
      $region49: #{tpu_custom_call.1} parent=5 // pred_check
        %p362 = pneg %p361
      $region50: #{tpu_custom_call.1} parent=5 // pred_check_branch
        %364 = sbr.rel (%p362) target = $region52
      $region51: #{tpu_custom_call.1} parent=5 // pred_region
        // Predicated region
        $region53: #{tpu_custom_call.1} parent=51 // pred_check
          %p365 = pneg %p42
        $region54: #{tpu_custom_call.1} parent=51 // pred_check_branch
          %367 = sbr.rel (%p365) target = $region56
        $region55: #{tpu_custom_call.1} parent=51 // pred_region
          %p368 = scmp.lt.s32.totalorder %s22, 1
          %s369 = scalar_select %p368, %s22, 1
          %s370 = smul.addr %s369, 2
          %s371 = smul.addr %s370, 8
          %s372 = scalar_lea.vmem %s0, %s371
        $region56: #{tpu_custom_call.1} parent=51 // pred_fallthru
          _
        // Predicated region
        $region57: #{tpu_custom_call.1} parent=51 // pred_check
          %p373 = pneg %p257
        $region58: #{tpu_custom_call.1} parent=51 // pred_check_branch
          %375 = sbr.rel (%p373) target = $region60
        $region59: #{tpu_custom_call.1} parent=51 // pred_region
          %p376 = scmp.lt.s32.totalorder %s22, 1
          %s377 = scalar_select %p376, %s22, 1
          %s378 = smul.addr %s377, 2
          %s379 = scalar_lea.vmem %s10, %s378
        $region60: #{tpu_custom_call.1} parent=51 // pred_fallthru
          _
      $region52: #{tpu_custom_call.1} parent=5 // pred_fallthru
        _
      %p380 = scmp.le.s32.totalorder 1, %s22
      %p381 = scmp.lt.s32.totalorder %s22, 3
      %p382 = pnand %p380, %p381
      %p383 = pneg %p382
      // Predicated region
      $region61: #{tpu_custom_call.1} parent=5 // pred_check
        _
      $region62: #{tpu_custom_call.1} parent=5 // pred_check_branch
        %385 = sbr.rel (%p382) target = $region64
      $region63: #{tpu_custom_call.1} parent=5 // pred_region
        %s386 = ssub.s32 %s22, 1
        // Predicated region
        $region65: #{tpu_custom_call.1} parent=63 // pred_check
          %p387 = pneg %p69
        $region66: #{tpu_custom_call.1} parent=63 // pred_check_branch
          %389 = sbr.rel (%p387) target = $region68
        $region67: #{tpu_custom_call.1} parent=63 // pred_region
          %390 = dma.done [#allocation3], 512
        $region68: #{tpu_custom_call.1} parent=63 // pred_fallthru
          _
        // Predicated region
        $region69: #{tpu_custom_call.1} parent=63 // pred_check
          %p391 = pneg %p111
        $region70: #{tpu_custom_call.1} parent=63 // pred_check_branch
          %393 = sbr.rel (%p391) target = $region72
        $region71: #{tpu_custom_call.1} parent=63 // pred_region
          %394 = dma.done [#allocation6], 3072
        $region72: #{tpu_custom_call.1} parent=63 // pred_fallthru
          _
        // Predicated region
        $region73: #{tpu_custom_call.1} parent=63 // pred_check
          %p395 = pneg %p132
        $region74: #{tpu_custom_call.1} parent=63 // pred_check_branch
          %397 = sbr.rel (%p395) target = $region76
        $region75: #{tpu_custom_call.1} parent=63 // pred_region
          %398 = dma.done [#allocation6], 512
        $region76: #{tpu_custom_call.1} parent=63 // pred_fallthru
          _
        %p399 = scmp.lt.s32.totalorder %s27, 1
        %s400 = scalar_select %p399, %s27, 1
        %s401 = smul.addr %s400, 2
        %s402 = smul.addr %s401, 8
        %s403 = scalar_lea.vmem %s0, %s402
        %p404 = pneg %p48
        %p405 = pneg %p45
        %p406 = pneg %p69
        %p407 = pneg %p66
        %p408 = pneg %p90
        %p409 = pneg %p87
        %p410 = pneg %p111
        %p411 = pneg %p108
        %p412 = pneg %p132
        %p413 = pneg %p129
        %p414 = pneg %p153
        %p415 = pneg %p150
        %p416 = pneg %p174
        %p417 = pneg %p171
        %p418 = pneg %p195
        %p419 = pneg %p192
        %p420 = pneg %p216
        %p421 = pneg %p213
        %p422 = pneg %p237
        %p423 = pneg %p234
        %p424 = scmp.lt.s32.totalorder %s27, 1
        %s425 = scalar_select %p424, %s27, 1
        %s426 = smul.addr %s425, 2
        %s427 = scalar_lea.vmem %s10, %s426
        %p428 = pneg %p263
        %p429 = pneg %p260
        %p430 = pneg %p289
        %p431 = pneg %p286
        %s432 = sand.u32 %s276, 1
        %s433 = scalar_lea.sflag [#allocation4], %s432
        %s434 = sand.u32 %s276, 1
        %s435 = smul.addr %s434, 16
        %s436 = scalar_lea.vmem [#allocation8], %s435
        %p437 = scmp.lt.s32.totalorder %s27, 1
        %s438 = scalar_select %p437, %s27, 1
        %s439 = smul.addr %s438, 2
        %s440 = smul.addr %s439, 8
        %s441 = scalar_lea.vmem %s0, %s440
        %p442 = scmp.lt.s32.totalorder %s27, 1
        %s443 = scalar_select %p442, %s27, 1
        %s444 = smul.addr %s443, 2
        %s445 = scalar_lea.vmem %s10, %s444
        %v447 = vld [vmem:[%s441] sm:$0xff]
        %v448 = vld [vmem:[%s441 + $0x8] sm:$0xff]
        %v449 = vld [vmem:[#allocation2] sm:$0xff]
        %v450 = vld [vmem:[#allocation2 + $0x8] sm:$0xff]
        %s451 = scalar_lea.vmem [#allocation2], 16
        %v452 = vld [vmem:[%s451] sm:$0xff]
        %v453 = vld [vmem:[%s451 + $0x8] sm:$0xff]
        %v454 = vld [vmem:[%s8] sm:$0xff]
        %v455 = vld [vmem:[%s8 + $0x8] sm:$0xff]
        %v456 = vld [vmem:[%s8 + $0x10] sm:$0xff]
        %v457 = vld [vmem:[%s8 + $0x18] sm:$0xff]
        %v458 = vld [vmem:[%s8 + $0x20] sm:$0xff]
        %v459 = vld [vmem:[%s8 + $0x28] sm:$0xff]
        %v460 = vld [vmem:[%s8 + $0x30] sm:$0xff]
        %v461 = vld [vmem:[%s8 + $0x38] sm:$0xff]
        %v462 = vld [vmem:[%s8 + $0x40] sm:$0xff]
        %v463 = vld [vmem:[%s8 + $0x48] sm:$0xff]
        %v464 = vld [vmem:[%s8 + $0x50] sm:$0xff]
        %v465 = vld [vmem:[%s8 + $0x58] sm:$0xff]
        %v466 = vld [vmem:[%s8 + $0x60] sm:$0xff]
        %v467 = vld [vmem:[%s8 + $0x68] sm:$0xff]
        %v468 = vld [vmem:[%s8 + $0x70] sm:$0xff]
        %v469 = vld [vmem:[%s8 + $0x78] sm:$0xff]
        %v470 = vld [vmem:[%s9] sm:$0xff]
        %v471 = vld [vmem:[%s5] sm:$0x7]
        %v472 = vld [vmem:[%s6] sm:$0x7]
        %v473 = vld [vmem:[%s445] sm:$0x3]
        %vm474 = vcmask 130048
        %v476 = vsel %vm474, %v449, 0
        %v479 = vsel %vm474, %v450, 0
        %481 = vmatprep.subr.mxu0 0.0
        %482 = vmatpush1.msra.mxu0 %v447
        %483 = vmatprep.subr.mxu0 0.0
        %484 = vmatpush1.msra.mxu0 %v448
        %485 = vmatprep.subr.mxu0 0.0
        %486 = vmatpush1.msra.mxu0 0.0
        %487 = vmatprep.subr.mxu0 0.0
        %488 = vmatpush1.msra.mxu0 0.0
        %489 = vmatprep.subr.mxu0 0.0
        %490 = vmatpush1.msra.mxu0 0.0
        %491 = vmatprep.subr.mxu0 0.0
        %492 = vmatpush1.msra.mxu0 0.0
        %493 = vmatprep.subr.mxu0 0.0
        %494 = vmatpush1.msra.mxu0 0.0
        %495 = vmatprep.subr.mxu0 0.0
        %496 = vmatpush1.msra.mxu0 0.0
        %497 = vmatprep.subr.mxu0 0.0
        %498 = vmatpush1.msra.mxu0 0.0
        %499 = vmatprep.subr.mxu0 0.0
        %500 = vmatpush1.msra.mxu0 0.0
        %501 = vmatprep.subr.mxu0 0.0
        %502 = vmatpush1.msra.mxu0 0.0
        %503 = vmatprep.subr.mxu0 0.0
        %504 = vmatpush1.msra.mxu0 0.0
        %505 = vmatprep.subr.mxu0 0.0
        %506 = vmatpush1.msra.mxu0 0.0
        %507 = vmatprep.subr.mxu0 0.0
        %508 = vmatpush1.msra.mxu0 0.0
        %509 = vmatprep.subr.mxu0 0.0
        %510 = vmatpush1.msra.mxu0 0.0
        %511 = vmatprep.subr.mxu0 0.0
        %512 = vmatpush1.msra.mxu0 0.0
        %513 = vmatprep.subr.mxu0 0.0
        %514 = vmatpush1.msra.mxu0 0.0
        %515 = vmatprep.subr.mxu0 0.0
        %516 = vmatpush1.msra.mxu0 0.0
        %517 = vmatprep.subr.mxu0 0.0
        %518 = vmatpush1.msra.mxu0 0.0
        %519 = vmatprep.subr.mxu0 0.0
        %520 = vmatpush1.msra.mxu0 0.0
        %521 = vmatprep.subr.mxu0 0.0
        %522 = vmatpush1.msra.mxu0 0.0
        %523 = vmatprep.subr.mxu0 0.0
        %524 = vmatpush1.msra.mxu0 0.0
        %525 = vmatprep.subr.mxu0 0.0
        %526 = vmatpush1.msra.mxu0 0.0
        %527 = vmatprep.subr.mxu0 0.0
        %528 = vmatpush1.msra.mxu0 0.0
        %529 = vmatprep.subr.mxu0 0.0
        %530 = vmatpush1.msra.mxu0 0.0
        %531 = vmatprep.subr.mxu0 0.0
        %532 = vmatpush1.msra.mxu0 0.0
        %533 = vmatprep.subr.mxu0 0.0
        %534 = vmatpush1.msra.mxu0 0.0
        %535 = vmatprep.subr.mxu0 0.0
        %536 = vmatpush1.msra.mxu0 0.0
        %537 = vmatprep.subr.mxu0 0.0
        %538 = vmatpush1.msra.mxu0 0.0
        %539 = vmatprep.subr.mxu0 0.0
        %540 = vmatpush1.msra.mxu0 0.0
        %541 = vmatprep.subr.mxu0 0.0
        %542 = vmatpush1.msra.mxu0 0.0
        %543 = vmatprep.subr.mxu0 0.0
        %544 = vmatpush1.msra.mxu0 0.0
        %545 = vmatprep.mubr.f32.mxu0 0.0
        %546 = vmatmul.mubr.f32.gmra.mrb[0].mxu0 %v476
        %v547 = vpop.f32.mrb[0].mxu0
        %v548 = vadd.f32 0.0, %v547
        %v549 = vpop.f32.mrb[0].mxu0
        %550 = vmatprep.mubr.f32.mxu0 0.0
        %551 = vmatmul.mubr.f32.gmra.mrb[0].mxu0 %v479
        %v552 = vpop.f32.mrb[0].mxu0
        %v553 = vadd.f32 0.0, %v552
        %v554 = vpop.f32.mrb[0].mxu0
        %555 = vdwg.mxu0
        %v557 = vsel %vm474, %v452, 0
        %v560 = vsel %vm474, %v453, 0
        %562 = vmatprep.subr.mxu0 0.0
        %563 = vmatpush1.msra.mxu0 %v447
        %564 = vmatprep.subr.mxu0 0.0
        %565 = vmatpush1.msra.mxu0 %v448
        %566 = vmatprep.subr.mxu0 0.0
        %567 = vmatpush1.msra.mxu0 0.0
        %568 = vmatprep.subr.mxu0 0.0
        %569 = vmatpush1.msra.mxu0 0.0
        %570 = vmatprep.subr.mxu0 0.0
        %571 = vmatpush1.msra.mxu0 0.0
        %572 = vmatprep.subr.mxu0 0.0
        %573 = vmatpush1.msra.mxu0 0.0
        %574 = vmatprep.subr.mxu0 0.0
        %575 = vmatpush1.msra.mxu0 0.0
        %576 = vmatprep.subr.mxu0 0.0
        %577 = vmatpush1.msra.mxu0 0.0
        %578 = vmatprep.subr.mxu0 0.0
        %579 = vmatpush1.msra.mxu0 0.0
        %580 = vmatprep.subr.mxu0 0.0
        %581 = vmatpush1.msra.mxu0 0.0
        %582 = vmatprep.subr.mxu0 0.0
        %583 = vmatpush1.msra.mxu0 0.0
        %584 = vmatprep.subr.mxu0 0.0
        %585 = vmatpush1.msra.mxu0 0.0
        %586 = vmatprep.subr.mxu0 0.0
        %587 = vmatpush1.msra.mxu0 0.0
        %588 = vmatprep.subr.mxu0 0.0
        %589 = vmatpush1.msra.mxu0 0.0
        %590 = vmatprep.subr.mxu0 0.0
        %591 = vmatpush1.msra.mxu0 0.0
        %592 = vmatprep.subr.mxu0 0.0
        %593 = vmatpush1.msra.mxu0 0.0
        %594 = vmatprep.subr.mxu0 0.0
        %595 = vmatpush1.msra.mxu0 0.0
        %596 = vmatprep.subr.mxu0 0.0
        %597 = vmatpush1.msra.mxu0 0.0
        %598 = vmatprep.subr.mxu0 0.0
        %599 = vmatpush1.msra.mxu0 0.0
        %600 = vmatprep.subr.mxu0 0.0
        %601 = vmatpush1.msra.mxu0 0.0
        %602 = vmatprep.subr.mxu0 0.0
        %603 = vmatpush1.msra.mxu0 0.0
        %604 = vmatprep.subr.mxu0 0.0
        %605 = vmatpush1.msra.mxu0 0.0
        %606 = vmatprep.subr.mxu0 0.0
        %607 = vmatpush1.msra.mxu0 0.0
        %608 = vmatprep.subr.mxu0 0.0
        %609 = vmatpush1.msra.mxu0 0.0
        %610 = vmatprep.subr.mxu0 0.0
        %611 = vmatpush1.msra.mxu0 0.0
        %612 = vmatprep.subr.mxu0 0.0
        %613 = vmatpush1.msra.mxu0 0.0
        %614 = vmatprep.subr.mxu0 0.0
        %615 = vmatpush1.msra.mxu0 0.0
        %616 = vmatprep.subr.mxu0 0.0
        %617 = vmatpush1.msra.mxu0 0.0
        %618 = vmatprep.subr.mxu0 0.0
        %619 = vmatpush1.msra.mxu0 0.0
        %620 = vmatprep.subr.mxu0 0.0
        %621 = vmatpush1.msra.mxu0 0.0
        %622 = vmatprep.subr.mxu0 0.0
        %623 = vmatpush1.msra.mxu0 0.0
        %624 = vmatprep.subr.mxu0 0.0
        %625 = vmatpush1.msra.mxu0 0.0
        %626 = vmatprep.mubr.f32.mxu0 0.0
        %627 = vmatmul.mubr.f32.gmra.mrb[0].mxu0 %v557
        %v628 = vpop.f32.mrb[0].mxu0
        %v629 = vadd.f32 0.0, %v628
        %v630 = vpop.f32.mrb[0].mxu0
        %631 = vmatprep.mubr.f32.mxu0 0.0
        %632 = vmatmul.mubr.f32.gmra.mrb[0].mxu0 %v560
        %v633 = vpop.f32.mrb[0].mxu0
        %v634 = vadd.f32 0.0, %v633
        %v635 = vpop.f32.mrb[0].mxu0
        %636 = vdwg.mxu0
        %v637 = vpack.c.bf16 %v553, %v548
        %v638 = vld [vmem:[%s2] sm:$0xf]
        %v639 = vld [vmem:[%s2 + $0x4] sm:$0xf]
        %v640 = vld [vmem:[%s2 + $0x8] sm:$0xf]
        %v641 = vld [vmem:[%s2 + $0xc] sm:$0xf]
        %v642 = vld [vmem:[%s2 + $0x10] sm:$0xf]
        %v643 = vld [vmem:[%s2 + $0x14] sm:$0xf]
        %v644 = vld [vmem:[%s2 + $0x18] sm:$0xf]
        %v645 = vld [vmem:[%s2 + $0x1c] sm:$0xf]
        %v646 = vpack.c.bf16 %v448, %v447
        %s647 = scalar_lea.vmem %s2, 32
        %v648 = vld [vmem:[%s647] sm:$0xf]
        %v649 = vld [vmem:[%s647 + $0x4] sm:$0xf]
        %v650 = vld [vmem:[%s647 + $0x8] sm:$0xf]
        %v651 = vld [vmem:[%s647 + $0xc] sm:$0xf]
        %v652 = vld [vmem:[%s647 + $0x10] sm:$0xf]
        %v653 = vld [vmem:[%s647 + $0x14] sm:$0xf]
        %v654 = vld [vmem:[%s647 + $0x18] sm:$0xf]
        %v655 = vld [vmem:[%s647 + $0x1c] sm:$0xf]
        %v664 = vunpack.c.l.b16 %v648
        %v665 = vunpack.c.l.b16 %v649
        %v666 = vunpack.c.l.b16 %v650
        %v667 = vunpack.c.l.b16 %v651
        %v668 = vunpack.c.l.b16 %v652
        %v669 = vunpack.c.l.b16 %v653
        %v670 = vunpack.c.l.b16 %v654
        %v671 = vunpack.c.l.b16 %v655
        %v672 = vpack.c.b16 %v665, %v664
        %v673 = vpack.c.b16 %v667, %v666
        %v674 = vpack.c.b16 %v669, %v668
        %v675 = vpack.c.b16 %v671, %v670
        %vm680 = vcmask 523264
        %v682 = vsel %vm680, %v646, 0
        %684 = vmatprep.subr.bf16.mxu0 0
        %685 = vmatpush1.bf16.msra.mxu0 %v672
        %686 = vmatprep.subr.bf16.mxu0 0
        %687 = vmatpush1.bf16.msra.mxu0 %v673
        %688 = vmatprep.subr.bf16.mxu0 0
        %689 = vmatpush1.bf16.msra.mxu0 %v674
        %690 = vmatprep.subr.bf16.mxu0 0
        %691 = vmatpush1.bf16.msra.mxu0 %v675
        %692 = vmatprep.subr.bf16.mxu0 0
        %693 = vmatpush1.bf16.msra.mxu0 0
        %694 = vmatprep.subr.bf16.mxu0 0
        %695 = vmatpush1.bf16.msra.mxu0 0
        %696 = vmatprep.subr.bf16.mxu0 0
        %697 = vmatpush1.bf16.msra.mxu0 0
        %698 = vmatprep.subr.bf16.mxu0 0
        %699 = vmatpush1.bf16.msra.mxu0 0
        %700 = vmatprep.subr.bf16.mxu0 0
        %701 = vmatpush1.bf16.msra.mxu0 0
        %702 = vmatprep.subr.bf16.mxu0 0
        %703 = vmatpush1.bf16.msra.mxu0 0
        %704 = vmatprep.subr.bf16.mxu0 0
        %705 = vmatpush1.bf16.msra.mxu0 0
        %706 = vmatprep.subr.bf16.mxu0 0
        %707 = vmatpush1.bf16.msra.mxu0 0
        %708 = vmatprep.subr.bf16.mxu0 0
        %709 = vmatpush1.bf16.msra.mxu0 0
        %710 = vmatprep.subr.bf16.mxu0 0
        %711 = vmatpush1.bf16.msra.mxu0 0
        %712 = vmatprep.subr.bf16.mxu0 0
        %713 = vmatpush1.bf16.msra.mxu0 0
        %714 = vmatprep.subr.bf16.mxu0 0
        %715 = vmatpush1.bf16.msra.mxu0 0
        %716 = vmatprep.mubr.bf16.mxu0 0
        %717 = vmatmul.mubr.bf16.gmra.mrb[0].mxu0 %v682
        %v718 = vpop.f32.mrb[0].mxu0
        %v719 = vadd.f32 0.0, %v718
        %v720 = vpop.f32.mrb[0].mxu0
        %v721 = vpop.f32.mrb[0].mxu0
        %v722 = vadd.f32 0.0, %v721
        %v723 = vpop.f32.mrb[0].mxu0
        %724 = vdwg.mxu0
        %v733 = vunpack.c.l.b16 %v638
        %v734 = vunpack.c.l.b16 %v639
        %v735 = vunpack.c.l.b16 %v640
        %v736 = vunpack.c.l.b16 %v641
        %v737 = vunpack.c.l.b16 %v642
        %v738 = vunpack.c.l.b16 %v643
        %v739 = vunpack.c.l.b16 %v644
        %v740 = vunpack.c.l.b16 %v645
        %v741 = vpack.c.b16 %v734, %v733
        %v742 = vpack.c.b16 %v736, %v735
        %v743 = vpack.c.b16 %v738, %v737
        %v744 = vpack.c.b16 %v740, %v739
        %v750 = vsel %vm680, %v637, 0
        %752 = vmatprep.subr.bf16.mxu0 0
        %753 = vmatpush1.bf16.msra.mxu0 %v741
        %754 = vmatprep.subr.bf16.mxu0 0
        %755 = vmatpush1.bf16.msra.mxu0 %v742
        %756 = vmatprep.subr.bf16.mxu0 0
        %757 = vmatpush1.bf16.msra.mxu0 %v743
        %758 = vmatprep.subr.bf16.mxu0 0
        %759 = vmatpush1.bf16.msra.mxu0 %v744
        %760 = vmatprep.subr.bf16.mxu0 0
        %761 = vmatpush1.bf16.msra.mxu0 0
        %762 = vmatprep.subr.bf16.mxu0 0
        %763 = vmatpush1.bf16.msra.mxu0 0
        %764 = vmatprep.subr.bf16.mxu0 0
        %765 = vmatpush1.bf16.msra.mxu0 0
        %766 = vmatprep.subr.bf16.mxu0 0
        %767 = vmatpush1.bf16.msra.mxu0 0
        %768 = vmatprep.subr.bf16.mxu0 0
        %769 = vmatpush1.bf16.msra.mxu0 0
        %770 = vmatprep.subr.bf16.mxu0 0
        %771 = vmatpush1.bf16.msra.mxu0 0
        %772 = vmatprep.subr.bf16.mxu0 0
        %773 = vmatpush1.bf16.msra.mxu0 0
        %774 = vmatprep.subr.bf16.mxu0 0
        %775 = vmatpush1.bf16.msra.mxu0 0
        %776 = vmatprep.subr.bf16.mxu0 0
        %777 = vmatpush1.bf16.msra.mxu0 0
        %778 = vmatprep.subr.bf16.mxu0 0
        %779 = vmatpush1.bf16.msra.mxu0 0
        %780 = vmatprep.subr.bf16.mxu0 0
        %781 = vmatpush1.bf16.msra.mxu0 0
        %782 = vmatprep.subr.bf16.mxu0 0
        %783 = vmatpush1.bf16.msra.mxu0 0
        %784 = vmatprep.mubr.bf16.mxu0 0
        %785 = vmatmul.mubr.bf16.gmra.mrb[0].mxu0 %v750
        %v786 = vpop.f32.mrb[0].mxu0
        %v787 = vadd.f32 %v719, %v786
        %v788 = vpop.f32.mrb[0].mxu0
        %v789 = vpop.f32.mrb[0].mxu0
        %v790 = vadd.f32 %v722, %v789
        %v791 = vpop.f32.mrb[0].mxu0
        %792 = vdwg.mxu0
        %v793 = vpack.c.bf16 %v634, %v629
        %s794 = scalar_lea.vmem %s2, 64
        %v795 = vld [vmem:[%s794] sm:$0xf]
        %v796 = vld [vmem:[%s794 + $0x4] sm:$0xf]
        %v797 = vld [vmem:[%s794 + $0x8] sm:$0xf]
        %v798 = vld [vmem:[%s794 + $0xc] sm:$0xf]
        %v799 = vld [vmem:[%s794 + $0x10] sm:$0xf]
        %v800 = vld [vmem:[%s794 + $0x14] sm:$0xf]
        %v801 = vld [vmem:[%s794 + $0x18] sm:$0xf]
        %v802 = vld [vmem:[%s794 + $0x1c] sm:$0xf]
        %v811 = vunpack.c.l.b16 %v795
        %v812 = vunpack.c.l.b16 %v796
        %v813 = vunpack.c.l.b16 %v797
        %v814 = vunpack.c.l.b16 %v798
        %v815 = vunpack.c.l.b16 %v799
        %v816 = vunpack.c.l.b16 %v800
        %v817 = vunpack.c.l.b16 %v801
        %v818 = vunpack.c.l.b16 %v802
        %v819 = vpack.c.b16 %v812, %v811
        %v820 = vpack.c.b16 %v814, %v813
        %v821 = vpack.c.b16 %v816, %v815
        %v822 = vpack.c.b16 %v818, %v817
        %v828 = vsel %vm680, %v793, 0
        %830 = vmatprep.subr.bf16.mxu0 0
        %831 = vmatpush1.bf16.msra.mxu0 %v819
        %832 = vmatprep.subr.bf16.mxu0 0
        %833 = vmatpush1.bf16.msra.mxu0 %v820
        %834 = vmatprep.subr.bf16.mxu0 0
        %835 = vmatpush1.bf16.msra.mxu0 %v821
        %836 = vmatprep.subr.bf16.mxu0 0
        %837 = vmatpush1.bf16.msra.mxu0 %v822
        %838 = vmatprep.subr.bf16.mxu0 0
        %839 = vmatpush1.bf16.msra.mxu0 0
        %840 = vmatprep.subr.bf16.mxu0 0
        %841 = vmatpush1.bf16.msra.mxu0 0
        %842 = vmatprep.subr.bf16.mxu0 0
        %843 = vmatpush1.bf16.msra.mxu0 0
        %844 = vmatprep.subr.bf16.mxu0 0
        %845 = vmatpush1.bf16.msra.mxu0 0
        %846 = vmatprep.subr.bf16.mxu0 0
        %847 = vmatpush1.bf16.msra.mxu0 0
        %848 = vmatprep.subr.bf16.mxu0 0
        %849 = vmatpush1.bf16.msra.mxu0 0
        %850 = vmatprep.subr.bf16.mxu0 0
        %851 = vmatpush1.bf16.msra.mxu0 0
        %852 = vmatprep.subr.bf16.mxu0 0
        %853 = vmatpush1.bf16.msra.mxu0 0
        %854 = vmatprep.subr.bf16.mxu0 0
        %855 = vmatpush1.bf16.msra.mxu0 0
        %856 = vmatprep.subr.bf16.mxu0 0
        %857 = vmatpush1.bf16.msra.mxu0 0
        %858 = vmatprep.subr.bf16.mxu0 0
        %859 = vmatpush1.bf16.msra.mxu0 0
        %860 = vmatprep.subr.bf16.mxu0 0
        %861 = vmatpush1.bf16.msra.mxu0 0
        %862 = vmatprep.mubr.bf16.mxu0 0
        %863 = vmatmul.mubr.bf16.gmra.mrb[0].mxu0 %v828
        %v864 = vpop.f32.mrb[0].mxu0
        %v865 = vadd.f32 0.0, %v864
        %v866 = vpop.f32.mrb[0].mxu0
        %v867 = vpop.f32.mrb[0].mxu0
        %v868 = vadd.f32 0.0, %v867
        %v869 = vpop.f32.mrb[0].mxu0
        %870 = vdwg.mxu0
        %v871 = vadd.f32 %v787, %v865
        %v872 = vadd.f32 %v790, %v868
        %v873 = vlaneseq
        %v874 = vshrl.u32 %v873, 7
        %v875 = vsub.s32 0, %v874
        %v876 = vrot.slane %v471, %v875
        %v877 = vadd.f32 %v871, %v876
        %v878 = vadd.f32 %v872, %v876
        %v879 = vadd.f32 %v877, %v878
        %v880 = vrot.slane %v879, 4
        %v881 = vadd.f32 %v879, %v880
        %v882 = vrot.slane %v881, 2
        %v883 = vadd.f32 %v881, %v882
        %v884 = vrot.slane %v883, 1
        %v885 = vadd.f32 %v883, %v884
        %886 = vmatprep.subr.mxu0 0.0
        %887 = vmatpush1.msra.mxu0 %v454
        %888 = vmatprep.subr.mxu0 0.0
        %889 = vmatpush1.msra.mxu0 %v455
        %890 = vmatprep.subr.mxu0 0.0
        %891 = vmatpush1.msra.mxu0 %v456
        %892 = vmatprep.subr.mxu0 0.0
        %893 = vmatpush1.msra.mxu0 %v457
        %894 = vmatprep.subr.mxu0 0.0
        %895 = vmatpush1.msra.mxu0 %v458
        %896 = vmatprep.subr.mxu0 0.0
        %897 = vmatpush1.msra.mxu0 %v459
        %898 = vmatprep.subr.mxu0 0.0
        %899 = vmatpush1.msra.mxu0 %v460
        %900 = vmatprep.subr.mxu0 0.0
        %901 = vmatpush1.msra.mxu0 %v461
        %902 = vmatprep.subr.mxu0 0.0
        %903 = vmatpush1.msra.mxu0 %v462
        %904 = vmatprep.subr.mxu0 0.0
        %905 = vmatpush1.msra.mxu0 %v463
        %906 = vmatprep.subr.mxu0 0.0
        %907 = vmatpush1.msra.mxu0 %v464
        %908 = vmatprep.subr.mxu0 0.0
        %909 = vmatpush1.msra.mxu0 %v465
        %910 = vmatprep.subr.mxu0 0.0
        %911 = vmatpush1.msra.mxu0 %v466
        %912 = vmatprep.subr.mxu0 0.0
        %913 = vmatpush1.msra.mxu0 %v467
        %914 = vmatprep.subr.mxu0 0.0
        %915 = vmatpush1.msra.mxu0 %v468
        %916 = vmatprep.subr.mxu0 0.0
        %917 = vmatpush1.msra.mxu0 %v469
        %918 = vmatprep.subr.mxu0 0.0
        %919 = vmatpush1.msra.mxu0 0.0
        %920 = vmatprep.subr.mxu0 0.0
        %921 = vmatpush1.msra.mxu0 0.0
        %922 = vmatprep.subr.mxu0 0.0
        %923 = vmatpush1.msra.mxu0 0.0
        %924 = vmatprep.subr.mxu0 0.0
        %925 = vmatpush1.msra.mxu0 0.0
        %926 = vmatprep.subr.mxu0 0.0
        %927 = vmatpush1.msra.mxu0 0.0
        %928 = vmatprep.subr.mxu0 0.0
        %929 = vmatpush1.msra.mxu0 0.0
        %930 = vmatprep.subr.mxu0 0.0
        %931 = vmatpush1.msra.mxu0 0.0
        %932 = vmatprep.subr.mxu0 0.0
        %933 = vmatpush1.msra.mxu0 0.0
        %934 = vmatprep.subr.mxu0 0.0
        %935 = vmatpush1.msra.mxu0 0.0
        %936 = vmatprep.subr.mxu0 0.0
        %937 = vmatpush1.msra.mxu0 0.0
        %938 = vmatprep.subr.mxu0 0.0
        %939 = vmatpush1.msra.mxu0 0.0
        %940 = vmatprep.subr.mxu0 0.0
        %941 = vmatpush1.msra.mxu0 0.0
        %942 = vmatprep.subr.mxu0 0.0
        %943 = vmatpush1.msra.mxu0 0.0
        %944 = vmatprep.subr.mxu0 0.0
        %945 = vmatpush1.msra.mxu0 0.0
        %946 = vmatprep.subr.mxu0 0.0
        %947 = vmatpush1.msra.mxu0 0.0
        %948 = vmatprep.subr.mxu0 0.0
        %949 = vmatpush1.msra.mxu0 0.0
        %950 = vmatprep.mubr.f32.mxu0 0.0
        %951 = vmatmul.mubr.f32.gmra.mrb[0].mxu0 %v885
        %v952 = vpop.f32.mrb[0].mxu0
        %v953 = vadd.f32 0.0, %v952
        %v954 = vpop.f32.mrb[0].mxu0
        %955 = vdwg.mxu0
        %v956 = vmul.f32 %v953, 0.00390625
        %vm957 = vcmask 64512
        %v959 = vsel %vm957, %v956, 0
        %961 = vmatprep.subr.mxu0 0.0
        %962 = vmatpush1.msra.mxu0 %v470
        %963 = vmatprep.subr.mxu0 0.0
        %964 = vmatpush1.msra.mxu0 0.0
        %965 = vmatprep.subr.mxu0 0.0
        %966 = vmatpush1.msra.mxu0 0.0
        %967 = vmatprep.subr.mxu0 0.0
        %968 = vmatpush1.msra.mxu0 0.0
        %969 = vmatprep.subr.mxu0 0.0
        %970 = vmatpush1.msra.mxu0 0.0
        %971 = vmatprep.subr.mxu0 0.0
        %972 = vmatpush1.msra.mxu0 0.0
        %973 = vmatprep.subr.mxu0 0.0
        %974 = vmatpush1.msra.mxu0 0.0
        %975 = vmatprep.subr.mxu0 0.0
        %976 = vmatpush1.msra.mxu0 0.0
        %977 = vmatprep.subr.mxu0 0.0
        %978 = vmatpush1.msra.mxu0 0.0
        %979 = vmatprep.subr.mxu0 0.0
        %980 = vmatpush1.msra.mxu0 0.0
        %981 = vmatprep.subr.mxu0 0.0
        %982 = vmatpush1.msra.mxu0 0.0
        %983 = vmatprep.subr.mxu0 0.0
        %984 = vmatpush1.msra.mxu0 0.0
        %985 = vmatprep.subr.mxu0 0.0
        %986 = vmatpush1.msra.mxu0 0.0
        %987 = vmatprep.subr.mxu0 0.0
        %988 = vmatpush1.msra.mxu0 0.0
        %989 = vmatprep.subr.mxu0 0.0
        %990 = vmatpush1.msra.mxu0 0.0
        %991 = vmatprep.subr.mxu0 0.0
        %992 = vmatpush1.msra.mxu0 0.0
        %993 = vmatprep.subr.mxu0 0.0
        %994 = vmatpush1.msra.mxu0 0.0
        %995 = vmatprep.subr.mxu0 0.0
        %996 = vmatpush1.msra.mxu0 0.0
        %997 = vmatprep.subr.mxu0 0.0
        %998 = vmatpush1.msra.mxu0 0.0
        %999 = vmatprep.subr.mxu0 0.0
        %1000 = vmatpush1.msra.mxu0 0.0
        %1001 = vmatprep.subr.mxu0 0.0
        %1002 = vmatpush1.msra.mxu0 0.0
        %1003 = vmatprep.subr.mxu0 0.0
        %1004 = vmatpush1.msra.mxu0 0.0
        %1005 = vmatprep.subr.mxu0 0.0
        %1006 = vmatpush1.msra.mxu0 0.0
        %1007 = vmatprep.subr.mxu0 0.0
        %1008 = vmatpush1.msra.mxu0 0.0
        %1009 = vmatprep.subr.mxu0 0.0
        %1010 = vmatpush1.msra.mxu0 0.0
        %1011 = vmatprep.subr.mxu0 0.0
        %1012 = vmatpush1.msra.mxu0 0.0
        %1013 = vmatprep.subr.mxu0 0.0
        %1014 = vmatpush1.msra.mxu0 0.0
        %1015 = vmatprep.subr.mxu0 0.0
        %1016 = vmatpush1.msra.mxu0 0.0
        %1017 = vmatprep.subr.mxu0 0.0
        %1018 = vmatpush1.msra.mxu0 0.0
        %1019 = vmatprep.subr.mxu0 0.0
        %1020 = vmatpush1.msra.mxu0 0.0
        %1021 = vmatprep.subr.mxu0 0.0
        %1022 = vmatpush1.msra.mxu0 0.0
        %1023 = vmatprep.subr.mxu0 0.0
        %1024 = vmatpush1.msra.mxu0 0.0
        %1025 = vmatprep.mubr.f32.mxu0 0.0
        %1026 = vmatmul.mubr.f32.gmra.mrb[0].mxu0 %v959
        %v1027 = vpop.f32.mrb[0].mxu0
        %v1028 = vadd.f32 0.0, %v1027
        %v1029 = vpop.f32.mrb[0].mxu0
        %1030 = vdwg.mxu0
        %v1031 = vlaneseq
        %v1032 = vshrl.u32 %v1031, 7
        %v1033 = vsub.s32 0, %v1032
        %v1034 = vrot.slane %v1028, %v1033
        %v1035 = vsub.f32 %v877, %v1034
        %v1036 = vsub.f32 %v878, %v1034
        %v1037 = vmul.f32 %v1035, %v1035
        %v1038 = vmul.f32 %v1036, %v1036
        %v1039 = vadd.f32 %v1037, %v1038
        %v1040 = vrot.slane %v1039, 4
        %v1041 = vadd.f32 %v1039, %v1040
        %v1042 = vrot.slane %v1041, 2
        %v1043 = vadd.f32 %v1041, %v1042
        %v1044 = vrot.slane %v1043, 1
        %v1045 = vadd.f32 %v1043, %v1044
        %1046 = vmatprep.subr.mxu0 0.0
        %1047 = vmatpush1.msra.mxu0 %v454
        %1048 = vmatprep.subr.mxu0 0.0
        %1049 = vmatpush1.msra.mxu0 %v455
        %1050 = vmatprep.subr.mxu0 0.0
        %1051 = vmatpush1.msra.mxu0 %v456
        %1052 = vmatprep.subr.mxu0 0.0
        %1053 = vmatpush1.msra.mxu0 %v457
        %1054 = vmatprep.subr.mxu0 0.0
        %1055 = vmatpush1.msra.mxu0 %v458
        %1056 = vmatprep.subr.mxu0 0.0
        %1057 = vmatpush1.msra.mxu0 %v459
        %1058 = vmatprep.subr.mxu0 0.0
        %1059 = vmatpush1.msra.mxu0 %v460
        %1060 = vmatprep.subr.mxu0 0.0
        %1061 = vmatpush1.msra.mxu0 %v461
        %1062 = vmatprep.subr.mxu0 0.0
        %1063 = vmatpush1.msra.mxu0 %v462
        %1064 = vmatprep.subr.mxu0 0.0
        %1065 = vmatpush1.msra.mxu0 %v463
        %1066 = vmatprep.subr.mxu0 0.0
        %1067 = vmatpush1.msra.mxu0 %v464
        %1068 = vmatprep.subr.mxu0 0.0
        %1069 = vmatpush1.msra.mxu0 %v465
        %1070 = vmatprep.subr.mxu0 0.0
        %1071 = vmatpush1.msra.mxu0 %v466
        %1072 = vmatprep.subr.mxu0 0.0
        %1073 = vmatpush1.msra.mxu0 %v467
        %1074 = vmatprep.subr.mxu0 0.0
        %1075 = vmatpush1.msra.mxu0 %v468
        %1076 = vmatprep.subr.mxu0 0.0
        %1077 = vmatpush1.msra.mxu0 %v469
        %1078 = vmatprep.subr.mxu0 0.0
        %1079 = vmatpush1.msra.mxu0 0.0
        %1080 = vmatprep.subr.mxu0 0.0
        %1081 = vmatpush1.msra.mxu0 0.0
        %1082 = vmatprep.subr.mxu0 0.0
        %1083 = vmatpush1.msra.mxu0 0.0
        %1084 = vmatprep.subr.mxu0 0.0
        %1085 = vmatpush1.msra.mxu0 0.0
        %1086 = vmatprep.subr.mxu0 0.0
        %1087 = vmatpush1.msra.mxu0 0.0
        %1088 = vmatprep.subr.mxu0 0.0
        %1089 = vmatpush1.msra.mxu0 0.0
        %1090 = vmatprep.subr.mxu0 0.0
        %1091 = vmatpush1.msra.mxu0 0.0
        %1092 = vmatprep.subr.mxu0 0.0
        %1093 = vmatpush1.msra.mxu0 0.0
        %1094 = vmatprep.subr.mxu0 0.0
        %1095 = vmatpush1.msra.mxu0 0.0
        %1096 = vmatprep.subr.mxu0 0.0
        %1097 = vmatpush1.msra.mxu0 0.0
        %1098 = vmatprep.subr.mxu0 0.0
        %1099 = vmatpush1.msra.mxu0 0.0
        %1100 = vmatprep.subr.mxu0 0.0
        %1101 = vmatpush1.msra.mxu0 0.0
        %1102 = vmatprep.subr.mxu0 0.0
        %1103 = vmatpush1.msra.mxu0 0.0
        %1104 = vmatprep.subr.mxu0 0.0
        %1105 = vmatpush1.msra.mxu0 0.0
        %1106 = vmatprep.subr.mxu0 0.0
        %1107 = vmatpush1.msra.mxu0 0.0
        %1108 = vmatprep.subr.mxu0 0.0
        %1109 = vmatpush1.msra.mxu0 0.0
        %1110 = vmatprep.mubr.f32.mxu0 0.0
        %1111 = vmatmul.mubr.f32.gmra.mrb[0].mxu0 %v1045
        %v1112 = vpop.f32.mrb[0].mxu0
        %v1113 = vadd.f32 0.0, %v1112
        %v1114 = vpop.f32.mrb[0].mxu0
        %1115 = vdwg.mxu0
        %v1116 = vmul.f32 %v1113, 0.00390625
        %v1118 = vsel %vm957, %v1116, 0
        %1120 = vmatprep.subr.mxu0 0.0
        %1121 = vmatpush1.msra.mxu0 %v470
        %1122 = vmatprep.subr.mxu0 0.0
        %1123 = vmatpush1.msra.mxu0 0.0
        %1124 = vmatprep.subr.mxu0 0.0
        %1125 = vmatpush1.msra.mxu0 0.0
        %1126 = vmatprep.subr.mxu0 0.0
        %1127 = vmatpush1.msra.mxu0 0.0
        %1128 = vmatprep.subr.mxu0 0.0
        %1129 = vmatpush1.msra.mxu0 0.0
        %1130 = vmatprep.subr.mxu0 0.0
        %1131 = vmatpush1.msra.mxu0 0.0
        %1132 = vmatprep.subr.mxu0 0.0
        %1133 = vmatpush1.msra.mxu0 0.0
        %1134 = vmatprep.subr.mxu0 0.0
        %1135 = vmatpush1.msra.mxu0 0.0
        %1136 = vmatprep.subr.mxu0 0.0
        %1137 = vmatpush1.msra.mxu0 0.0
        %1138 = vmatprep.subr.mxu0 0.0
        %1139 = vmatpush1.msra.mxu0 0.0
        %1140 = vmatprep.subr.mxu0 0.0
        %1141 = vmatpush1.msra.mxu0 0.0
        %1142 = vmatprep.subr.mxu0 0.0
        %1143 = vmatpush1.msra.mxu0 0.0
        %1144 = vmatprep.subr.mxu0 0.0
        %1145 = vmatpush1.msra.mxu0 0.0
        %1146 = vmatprep.subr.mxu0 0.0
        %1147 = vmatpush1.msra.mxu0 0.0
        %1148 = vmatprep.subr.mxu0 0.0
        %1149 = vmatpush1.msra.mxu0 0.0
        %1150 = vmatprep.subr.mxu0 0.0
        %1151 = vmatpush1.msra.mxu0 0.0
        %1152 = vmatprep.subr.mxu0 0.0
        %1153 = vmatpush1.msra.mxu0 0.0
        %1154 = vmatprep.subr.mxu0 0.0
        %1155 = vmatpush1.msra.mxu0 0.0
        %1156 = vmatprep.subr.mxu0 0.0
        %1157 = vmatpush1.msra.mxu0 0.0
        %1158 = vmatprep.subr.mxu0 0.0
        %1159 = vmatpush1.msra.mxu0 0.0
        %1160 = vmatprep.subr.mxu0 0.0
        %1161 = vmatpush1.msra.mxu0 0.0
        %1162 = vmatprep.subr.mxu0 0.0
        %1163 = vmatpush1.msra.mxu0 0.0
        %1164 = vmatprep.subr.mxu0 0.0
        %1165 = vmatpush1.msra.mxu0 0.0
        %1166 = vmatprep.subr.mxu0 0.0
        %1167 = vmatpush1.msra.mxu0 0.0
        %1168 = vmatprep.subr.mxu0 0.0
        %1169 = vmatpush1.msra.mxu0 0.0
        %1170 = vmatprep.subr.mxu0 0.0
        %1171 = vmatpush1.msra.mxu0 0.0
        %1172 = vmatprep.subr.mxu0 0.0
        %1173 = vmatpush1.msra.mxu0 0.0
        %1174 = vmatprep.subr.mxu0 0.0
        %1175 = vmatpush1.msra.mxu0 0.0
        %1176 = vmatprep.subr.mxu0 0.0
        %1177 = vmatpush1.msra.mxu0 0.0
        %1178 = vmatprep.subr.mxu0 0.0
        %1179 = vmatpush1.msra.mxu0 0.0
        %1180 = vmatprep.subr.mxu0 0.0
        %1181 = vmatpush1.msra.mxu0 0.0
        %1182 = vmatprep.subr.mxu0 0.0
        %1183 = vmatpush1.msra.mxu0 0.0
        %1184 = vmatprep.mubr.f32.mxu0 0.0
        %1185 = vmatmul.mubr.f32.gmra.mrb[0].mxu0 %v1118
        %v1186 = vpop.f32.mrb[0].mxu0
        %v1187 = vadd.f32 1e-05, %v1186
        %v1188 = vpop.f32.mrb[0].mxu0
        %1189 = vdwg.mxu0
        %v1190 = vrsqrt.pop %v1187
        %v1191 = vlaneseq
        %v1192 = vshrl.u32 %v1191, 7
        %v1193 = vsub.s32 0, %v1192
        %v1194 = vrot.slane %v1190, %v1193
        %v1195 = vmul.f32 %v1035, %v1194
        %v1196 = vmul.f32 %v1036, %v1194
        %v1197 = vlaneseq
        %v1198 = vshrl.u32 %v1197, 7
        %v1199 = vsub.s32 1, %v1198
        %v1200 = vrot.slane %v471, %v1199
        %v1201 = vmul.f32 %v1195, %v1200
        %v1202 = vmul.f32 %v1196, %v1200
        %v1203 = vlaneseq
        %v1204 = vshrl.u32 %v1203, 7
        %v1205 = vsub.s32 2, %v1204
        %v1206 = vrot.slane %v471, %v1205
        %v1207 = vadd.f32 %v1201, %v1206
        %v1208 = vadd.f32 %v1202, %v1206
        %v1209 = vlaneseq
        %v1210 = vshrl.u32 %v1209, 7
        %v1211 = vsub.s32 0, %v1210
        %v1212 = vrot.slane %v473, %v1211
        %v1213 = vmul.f32 %v1207, %v1212
        %v1214 = vmul.f32 %v1208, %v1212
        %v1215 = vlaneseq
        %v1216 = vshrl.u32 %v1215, 7
        %v1217 = vsub.s32 1, %v1216
        %v1218 = vrot.slane %v473, %v1217
        %v1219 = vadd.f32 %v1213, %v1218
        %v1220 = vadd.f32 %v1214, %v1218
        %v1221 = vxor.u32 %v1219, 2147483648
        %v1222 = vxor.u32 %v1220, 2147483648
        %v1223 = vmul.f32 %v1221, 1.442695
        %v1224 = vpow.pop %v1223
        %v1225 = vmul.f32 %v1222, 1.442695
        %v1226 = vpow.pop %v1225
        %v1227 = vadd.f32 %v1224, 1.0
        %v1228 = vadd.f32 %v1226, 1.0
        %v1229 = vrcp.pop %v1227
        %v1230 = vmul.f32 1.0, %v1229
        %v1231 = vrcp.pop %v1228
        %v1232 = vmul.f32 1.0, %v1231
        %v1233 = vmul.f32 %v1219, %v1230
        %v1234 = vmul.f32 %v1220, %v1232
        %1235 = vmatprep.subr.mxu0 0.0
        %1236 = vmatpush1.msra.mxu0 %v1233
        %1237 = vmatprep.subr.mxu0 0.0
        %1238 = vmatpush1.msra.mxu0 %v1234
        %1239 = vmatprep.subr.mxu0 0.0
        %1240 = vmatpush1.msra.mxu0 0.0
        %1241 = vmatprep.subr.mxu0 0.0
        %1242 = vmatpush1.msra.mxu0 0.0
        %1243 = vmatprep.subr.mxu0 0.0
        %1244 = vmatpush1.msra.mxu0 0.0
        %1245 = vmatprep.subr.mxu0 0.0
        %1246 = vmatpush1.msra.mxu0 0.0
        %1247 = vmatprep.subr.mxu0 0.0
        %1248 = vmatpush1.msra.mxu0 0.0
        %1249 = vmatprep.subr.mxu0 0.0
        %1250 = vmatpush1.msra.mxu0 0.0
        %1251 = vmatprep.subr.mxu0 0.0
        %1252 = vmatpush1.msra.mxu0 0.0
        %1253 = vmatprep.subr.mxu0 0.0
        %1254 = vmatpush1.msra.mxu0 0.0
        %1255 = vmatprep.subr.mxu0 0.0
        %1256 = vmatpush1.msra.mxu0 0.0
        %1257 = vmatprep.subr.mxu0 0.0
        %1258 = vmatpush1.msra.mxu0 0.0
        %1259 = vmatprep.subr.mxu0 0.0
        %1260 = vmatpush1.msra.mxu0 0.0
        %1261 = vmatprep.subr.mxu0 0.0
        %1262 = vmatpush1.msra.mxu0 0.0
        %1263 = vmatprep.subr.mxu0 0.0
        %1264 = vmatpush1.msra.mxu0 0.0
        %1265 = vmatprep.subr.mxu0 0.0
        %1266 = vmatpush1.msra.mxu0 0.0
        %1267 = vmatprep.subr.mxu0 0.0
        %1268 = vmatpush1.msra.mxu0 0.0
        %1269 = vmatprep.subr.mxu0 0.0
        %1270 = vmatpush1.msra.mxu0 0.0
        %1271 = vmatprep.subr.mxu0 0.0
        %1272 = vmatpush1.msra.mxu0 0.0
        %1273 = vmatprep.subr.mxu0 0.0
        %1274 = vmatpush1.msra.mxu0 0.0
        %1275 = vmatprep.subr.mxu0 0.0
        %1276 = vmatpush1.msra.mxu0 0.0
        %1277 = vmatprep.subr.mxu0 0.0
        %1278 = vmatpush1.msra.mxu0 0.0
        %1279 = vmatprep.subr.mxu0 0.0
        %1280 = vmatpush1.msra.mxu0 0.0
        %1281 = vmatprep.subr.mxu0 0.0
        %1282 = vmatpush1.msra.mxu0 0.0
        %1283 = vmatprep.subr.mxu0 0.0
        %1284 = vmatpush1.msra.mxu0 0.0
        %1285 = vmatprep.subr.mxu0 0.0
        %1286 = vmatpush1.msra.mxu0 0.0
        %1287 = vmatprep.subr.mxu0 0.0
        %1288 = vmatpush1.msra.mxu0 0.0
        %1289 = vmatprep.subr.mxu0 0.0
        %1290 = vmatpush1.msra.mxu0 0.0
        %1291 = vmatprep.subr.mxu0 0.0
        %1292 = vmatpush1.msra.mxu0 0.0
        %1293 = vmatprep.subr.mxu0 0.0
        %1294 = vmatpush1.msra.mxu0 0.0
        %1295 = vmatprep.subr.mxu0 0.0
        %1296 = vmatpush1.msra.mxu0 0.0
        %1297 = vmatprep.subr.mxu0 0.0
        %1298 = vmatpush1.msra.mxu0 0.0
        %1299 = vmatprep.mubr.f32.mxu0 0.0
        %1300 = vmatmul.mubr.f32.gmra.mrb[0].mxu0 %v476
        %v1301 = vpop.f32.mrb[0].mxu0
        %v1302 = vadd.f32 0.0, %v1301
        %v1303 = vpop.f32.mrb[0].mxu0
        %1304 = vmatprep.mubr.f32.mxu0 0.0
        %1305 = vmatmul.mubr.f32.gmra.mrb[0].mxu0 %v479
        %v1306 = vpop.f32.mrb[0].mxu0
        %v1307 = vadd.f32 0.0, %v1306
        %v1308 = vpop.f32.mrb[0].mxu0
        %1309 = vdwg.mxu0
        %1310 = vmatprep.subr.mxu0 0.0
        %1311 = vmatpush1.msra.mxu0 %v1233
        %1312 = vmatprep.subr.mxu0 0.0
        %1313 = vmatpush1.msra.mxu0 %v1234
        %1314 = vmatprep.subr.mxu0 0.0
        %1315 = vmatpush1.msra.mxu0 0.0
        %1316 = vmatprep.subr.mxu0 0.0
        %1317 = vmatpush1.msra.mxu0 0.0
        %1318 = vmatprep.subr.mxu0 0.0
        %1319 = vmatpush1.msra.mxu0 0.0
        %1320 = vmatprep.subr.mxu0 0.0
        %1321 = vmatpush1.msra.mxu0 0.0
        %1322 = vmatprep.subr.mxu0 0.0
        %1323 = vmatpush1.msra.mxu0 0.0
        %1324 = vmatprep.subr.mxu0 0.0
        %1325 = vmatpush1.msra.mxu0 0.0
        %1326 = vmatprep.subr.mxu0 0.0
        %1327 = vmatpush1.msra.mxu0 0.0
        %1328 = vmatprep.subr.mxu0 0.0
        %1329 = vmatpush1.msra.mxu0 0.0
        %1330 = vmatprep.subr.mxu0 0.0
        %1331 = vmatpush1.msra.mxu0 0.0
        %1332 = vmatprep.subr.mxu0 0.0
        %1333 = vmatpush1.msra.mxu0 0.0
        %1334 = vmatprep.subr.mxu0 0.0
        %1335 = vmatpush1.msra.mxu0 0.0
        %1336 = vmatprep.subr.mxu0 0.0
        %1337 = vmatpush1.msra.mxu0 0.0
        %1338 = vmatprep.subr.mxu0 0.0
        %1339 = vmatpush1.msra.mxu0 0.0
        %1340 = vmatprep.subr.mxu0 0.0
        %1341 = vmatpush1.msra.mxu0 0.0
        %1342 = vmatprep.subr.mxu0 0.0
        %1343 = vmatpush1.msra.mxu0 0.0
        %1344 = vmatprep.subr.mxu0 0.0
        %1345 = vmatpush1.msra.mxu0 0.0
        %1346 = vmatprep.subr.mxu0 0.0
        %1347 = vmatpush1.msra.mxu0 0.0
        %1348 = vmatprep.subr.mxu0 0.0
        %1349 = vmatpush1.msra.mxu0 0.0
        %1350 = vmatprep.subr.mxu0 0.0
        %1351 = vmatpush1.msra.mxu0 0.0
        %1352 = vmatprep.subr.mxu0 0.0
        %1353 = vmatpush1.msra.mxu0 0.0
        %1354 = vmatprep.subr.mxu0 0.0
        %1355 = vmatpush1.msra.mxu0 0.0
        %1356 = vmatprep.subr.mxu0 0.0
        %1357 = vmatpush1.msra.mxu0 0.0
        %1358 = vmatprep.subr.mxu0 0.0
        %1359 = vmatpush1.msra.mxu0 0.0
        %1360 = vmatprep.subr.mxu0 0.0
        %1361 = vmatpush1.msra.mxu0 0.0
        %1362 = vmatprep.subr.mxu0 0.0
        %1363 = vmatpush1.msra.mxu0 0.0
        %1364 = vmatprep.subr.mxu0 0.0
        %1365 = vmatpush1.msra.mxu0 0.0
        %1366 = vmatprep.subr.mxu0 0.0
        %1367 = vmatpush1.msra.mxu0 0.0
        %1368 = vmatprep.subr.mxu0 0.0
        %1369 = vmatpush1.msra.mxu0 0.0
        %1370 = vmatprep.subr.mxu0 0.0
        %1371 = vmatpush1.msra.mxu0 0.0
        %1372 = vmatprep.subr.mxu0 0.0
        %1373 = vmatpush1.msra.mxu0 0.0
        %1374 = vmatprep.mubr.f32.mxu0 0.0
        %1375 = vmatmul.mubr.f32.gmra.mrb[0].mxu0 %v557
        %v1376 = vpop.f32.mrb[0].mxu0
        %v1377 = vadd.f32 0.0, %v1376
        %v1378 = vpop.f32.mrb[0].mxu0
        %1379 = vmatprep.mubr.f32.mxu0 0.0
        %1380 = vmatmul.mubr.f32.gmra.mrb[0].mxu0 %v560
        %v1381 = vpop.f32.mrb[0].mxu0
        %v1382 = vadd.f32 0.0, %v1381
        %v1383 = vpop.f32.mrb[0].mxu0
        %1384 = vdwg.mxu0
        %v1385 = vpack.c.bf16 %v1307, %v1302
        %v1386 = vld [vmem:[#allocation5] sm:$0xf]
        %v1387 = vld [vmem:[#allocation5 + $0x4] sm:$0xf]
        %v1388 = vld [vmem:[#allocation5 + $0x8] sm:$0xf]
        %v1389 = vld [vmem:[#allocation5 + $0xc] sm:$0xf]
        %v1390 = vld [vmem:[#allocation5 + $0x10] sm:$0xf]
        %v1391 = vld [vmem:[#allocation5 + $0x14] sm:$0xf]
        %v1392 = vld [vmem:[#allocation5 + $0x18] sm:$0xf]
        %v1393 = vld [vmem:[#allocation5 + $0x1c] sm:$0xf]
        %v1394 = vld [vmem:[#allocation5 + $0x20] sm:$0xf]
        %v1395 = vld [vmem:[#allocation5 + $0x24] sm:$0xf]
        %v1396 = vld [vmem:[#allocation5 + $0x28] sm:$0xf]
        %v1397 = vld [vmem:[#allocation5 + $0x2c] sm:$0xf]
        %v1398 = vld [vmem:[#allocation5 + $0x30] sm:$0xf]
        %v1399 = vld [vmem:[#allocation5 + $0x34] sm:$0xf]
        %v1400 = vld [vmem:[#allocation5 + $0x38] sm:$0xf]
        %v1401 = vld [vmem:[#allocation5 + $0x3c] sm:$0xf]
        %v1402 = vpack.c.bf16 %v1234, %v1233
        %s1403 = scalar_lea.vmem [#allocation5], 64
        %v1404 = vld [vmem:[%s1403] sm:$0xf]
        %v1405 = vld [vmem:[%s1403 + $0x4] sm:$0xf]
        %v1406 = vld [vmem:[%s1403 + $0x8] sm:$0xf]
        %v1407 = vld [vmem:[%s1403 + $0xc] sm:$0xf]
        %v1408 = vld [vmem:[%s1403 + $0x10] sm:$0xf]
        %v1409 = vld [vmem:[%s1403 + $0x14] sm:$0xf]
        %v1410 = vld [vmem:[%s1403 + $0x18] sm:$0xf]
        %v1411 = vld [vmem:[%s1403 + $0x1c] sm:$0xf]
        %v1412 = vld [vmem:[%s1403 + $0x20] sm:$0xf]
        %v1413 = vld [vmem:[%s1403 + $0x24] sm:$0xf]
        %v1414 = vld [vmem:[%s1403 + $0x28] sm:$0xf]
        %v1415 = vld [vmem:[%s1403 + $0x2c] sm:$0xf]
        %v1416 = vld [vmem:[%s1403 + $0x30] sm:$0xf]
        %v1417 = vld [vmem:[%s1403 + $0x34] sm:$0xf]
        %v1418 = vld [vmem:[%s1403 + $0x38] sm:$0xf]
        %v1419 = vld [vmem:[%s1403 + $0x3c] sm:$0xf]
        %v1436 = vunpack.c.l.b16 %v1404
        %v1437 = vunpack.c.l.b16 %v1405
        %v1438 = vunpack.c.l.b16 %v1406
        %v1439 = vunpack.c.l.b16 %v1407
        %v1440 = vunpack.c.l.b16 %v1408
        %v1441 = vunpack.c.l.b16 %v1409
        %v1442 = vunpack.c.l.b16 %v1410
        %v1443 = vunpack.c.l.b16 %v1411
        %v1444 = vunpack.c.l.b16 %v1412
        %v1445 = vunpack.c.l.b16 %v1413
        %v1446 = vunpack.c.l.b16 %v1414
        %v1447 = vunpack.c.l.b16 %v1415
        %v1448 = vunpack.c.l.b16 %v1416
        %v1449 = vunpack.c.l.b16 %v1417
        %v1450 = vunpack.c.l.b16 %v1418
        %v1451 = vunpack.c.l.b16 %v1419
        %v1452 = vpack.c.b16 %v1437, %v1436
        %v1453 = vpack.c.b16 %v1439, %v1438
        %v1454 = vpack.c.b16 %v1441, %v1440
        %v1455 = vpack.c.b16 %v1443, %v1442
        %v1456 = vpack.c.b16 %v1445, %v1444
        %v1457 = vpack.c.b16 %v1447, %v1446
        %v1458 = vpack.c.b16 %v1449, %v1448
        %v1459 = vpack.c.b16 %v1451, %v1450
        %1468 = vmatprep.subr.bf16.mxu0 0
        %1469 = vmatpush1.bf16.msra.mxu0 %v1452
        %1470 = vmatprep.subr.bf16.mxu0 0
        %1471 = vmatpush1.bf16.msra.mxu0 %v1453
        %1472 = vmatprep.subr.bf16.mxu0 0
        %1473 = vmatpush1.bf16.msra.mxu0 %v1454
        %1474 = vmatprep.subr.bf16.mxu0 0
        %1475 = vmatpush1.bf16.msra.mxu0 %v1455
        %1476 = vmatprep.subr.bf16.mxu0 0
        %1477 = vmatpush1.bf16.msra.mxu0 %v1456
        %1478 = vmatprep.subr.bf16.mxu0 0
        %1479 = vmatpush1.bf16.msra.mxu0 %v1457
        %1480 = vmatprep.subr.bf16.mxu0 0
        %1481 = vmatpush1.bf16.msra.mxu0 %v1458
        %1482 = vmatprep.subr.bf16.mxu0 0
        %1483 = vmatpush1.bf16.msra.mxu0 %v1459
        %1484 = vmatprep.subr.bf16.mxu0 0
        %1485 = vmatpush1.bf16.msra.mxu0 0
        %1486 = vmatprep.subr.bf16.mxu0 0
        %1487 = vmatpush1.bf16.msra.mxu0 0
        %1488 = vmatprep.subr.bf16.mxu0 0
        %1489 = vmatpush1.bf16.msra.mxu0 0
        %1490 = vmatprep.subr.bf16.mxu0 0
        %1491 = vmatpush1.bf16.msra.mxu0 0
        %1492 = vmatprep.subr.bf16.mxu0 0
        %1493 = vmatpush1.bf16.msra.mxu0 0
        %1494 = vmatprep.subr.bf16.mxu0 0
        %1495 = vmatpush1.bf16.msra.mxu0 0
        %1496 = vmatprep.subr.bf16.mxu0 0
        %1497 = vmatpush1.bf16.msra.mxu0 0
        %1498 = vmatprep.subr.bf16.mxu0 0
        %1499 = vmatpush1.bf16.msra.mxu0 0
        %1500 = vmatprep.mubr.bf16.mxu0 0
        %1501 = vmatmul.mubr.bf16.gmra.mrb[0].mxu0 %v1402
        %v1502 = vpop.f32.mrb[0].mxu0
        %v1503 = vadd.f32 0.0, %v1502
        %v1504 = vpop.f32.mrb[0].mxu0
        %v1505 = vpop.f32.mrb[0].mxu0
        %v1506 = vadd.f32 0.0, %v1505
        %v1507 = vpop.f32.mrb[0].mxu0
        %1508 = vdwg.mxu0
        %v1525 = vunpack.c.l.b16 %v1386
        %v1526 = vunpack.c.l.b16 %v1387
        %v1527 = vunpack.c.l.b16 %v1388
        %v1528 = vunpack.c.l.b16 %v1389
        %v1529 = vunpack.c.l.b16 %v1390
        %v1530 = vunpack.c.l.b16 %v1391
        %v1531 = vunpack.c.l.b16 %v1392
        %v1532 = vunpack.c.l.b16 %v1393
        %v1533 = vunpack.c.l.b16 %v1394
        %v1534 = vunpack.c.l.b16 %v1395
        %v1535 = vunpack.c.l.b16 %v1396
        %v1536 = vunpack.c.l.b16 %v1397
        %v1537 = vunpack.c.l.b16 %v1398
        %v1538 = vunpack.c.l.b16 %v1399
        %v1539 = vunpack.c.l.b16 %v1400
        %v1540 = vunpack.c.l.b16 %v1401
        %v1541 = vpack.c.b16 %v1526, %v1525
        %v1542 = vpack.c.b16 %v1528, %v1527
        %v1543 = vpack.c.b16 %v1530, %v1529
        %v1544 = vpack.c.b16 %v1532, %v1531
        %v1545 = vpack.c.b16 %v1534, %v1533
        %v1546 = vpack.c.b16 %v1536, %v1535
        %v1547 = vpack.c.b16 %v1538, %v1537
        %v1548 = vpack.c.b16 %v1540, %v1539
        %1557 = vmatprep.subr.bf16.mxu0 0
        %1558 = vmatpush1.bf16.msra.mxu0 %v1541
        %1559 = vmatprep.subr.bf16.mxu0 0
        %1560 = vmatpush1.bf16.msra.mxu0 %v1542
        %1561 = vmatprep.subr.bf16.mxu0 0
        %1562 = vmatpush1.bf16.msra.mxu0 %v1543
        %1563 = vmatprep.subr.bf16.mxu0 0
        %1564 = vmatpush1.bf16.msra.mxu0 %v1544
        %1565 = vmatprep.subr.bf16.mxu0 0
        %1566 = vmatpush1.bf16.msra.mxu0 %v1545
        %1567 = vmatprep.subr.bf16.mxu0 0
        %1568 = vmatpush1.bf16.msra.mxu0 %v1546
        %1569 = vmatprep.subr.bf16.mxu0 0
        %1570 = vmatpush1.bf16.msra.mxu0 %v1547
        %1571 = vmatprep.subr.bf16.mxu0 0
        %1572 = vmatpush1.bf16.msra.mxu0 %v1548
        %1573 = vmatprep.subr.bf16.mxu0 0
        %1574 = vmatpush1.bf16.msra.mxu0 0
        %1575 = vmatprep.subr.bf16.mxu0 0
        %1576 = vmatpush1.bf16.msra.mxu0 0
        %1577 = vmatprep.subr.bf16.mxu0 0
        %1578 = vmatpush1.bf16.msra.mxu0 0
        %1579 = vmatprep.subr.bf16.mxu0 0
        %1580 = vmatpush1.bf16.msra.mxu0 0
        %1581 = vmatprep.subr.bf16.mxu0 0
        %1582 = vmatpush1.bf16.msra.mxu0 0
        %1583 = vmatprep.subr.bf16.mxu0 0
        %1584 = vmatpush1.bf16.msra.mxu0 0
        %1585 = vmatprep.subr.bf16.mxu0 0
        %1586 = vmatpush1.bf16.msra.mxu0 0
        %1587 = vmatprep.subr.bf16.mxu0 0
        %1588 = vmatpush1.bf16.msra.mxu0 0
        %1589 = vmatprep.mubr.bf16.mxu0 0
        %1590 = vmatmul.mubr.bf16.gmra.mrb[0].mxu0 %v1385
        %v1591 = vpop.f32.mrb[0].mxu0
        %v1592 = vadd.f32 %v1503, %v1591
        %v1593 = vpop.f32.mrb[0].mxu0
        %v1594 = vpop.f32.mrb[0].mxu0
        %v1595 = vadd.f32 %v1506, %v1594
        %v1596 = vpop.f32.mrb[0].mxu0
        %1597 = vdwg.mxu0
        %v1598 = vpack.c.bf16 %v1382, %v1377
        %s1599 = scalar_lea.vmem [#allocation5], 128
        %v1600 = vld [vmem:[%s1599] sm:$0xf]
        %v1601 = vld [vmem:[%s1599 + $0x4] sm:$0xf]
        %v1602 = vld [vmem:[%s1599 + $0x8] sm:$0xf]
        %v1603 = vld [vmem:[%s1599 + $0xc] sm:$0xf]
        %v1604 = vld [vmem:[%s1599 + $0x10] sm:$0xf]
        %v1605 = vld [vmem:[%s1599 + $0x14] sm:$0xf]
        %v1606 = vld [vmem:[%s1599 + $0x18] sm:$0xf]
        %v1607 = vld [vmem:[%s1599 + $0x1c] sm:$0xf]
        %v1608 = vld [vmem:[%s1599 + $0x20] sm:$0xf]
        %v1609 = vld [vmem:[%s1599 + $0x24] sm:$0xf]
        %v1610 = vld [vmem:[%s1599 + $0x28] sm:$0xf]
        %v1611 = vld [vmem:[%s1599 + $0x2c] sm:$0xf]
        %v1612 = vld [vmem:[%s1599 + $0x30] sm:$0xf]
        %v1613 = vld [vmem:[%s1599 + $0x34] sm:$0xf]
        %v1614 = vld [vmem:[%s1599 + $0x38] sm:$0xf]
        %v1615 = vld [vmem:[%s1599 + $0x3c] sm:$0xf]
        %v1632 = vunpack.c.l.b16 %v1600
        %v1633 = vunpack.c.l.b16 %v1601
        %v1634 = vunpack.c.l.b16 %v1602
        %v1635 = vunpack.c.l.b16 %v1603
        %v1636 = vunpack.c.l.b16 %v1604
        %v1637 = vunpack.c.l.b16 %v1605
        %v1638 = vunpack.c.l.b16 %v1606
        %v1639 = vunpack.c.l.b16 %v1607
        %v1640 = vunpack.c.l.b16 %v1608
        %v1641 = vunpack.c.l.b16 %v1609
        %v1642 = vunpack.c.l.b16 %v1610
        %v1643 = vunpack.c.l.b16 %v1611
        %v1644 = vunpack.c.l.b16 %v1612
        %v1645 = vunpack.c.l.b16 %v1613
        %v1646 = vunpack.c.l.b16 %v1614
        %v1647 = vunpack.c.l.b16 %v1615
        %v1648 = vpack.c.b16 %v1633, %v1632
        %v1649 = vpack.c.b16 %v1635, %v1634
        %v1650 = vpack.c.b16 %v1637, %v1636
        %v1651 = vpack.c.b16 %v1639, %v1638
        %v1652 = vpack.c.b16 %v1641, %v1640
        %v1653 = vpack.c.b16 %v1643, %v1642
        %v1654 = vpack.c.b16 %v1645, %v1644
        %v1655 = vpack.c.b16 %v1647, %v1646
        %1664 = vmatprep.subr.bf16.mxu0 0
        %1665 = vmatpush1.bf16.msra.mxu0 %v1648
        %1666 = vmatprep.subr.bf16.mxu0 0
        %1667 = vmatpush1.bf16.msra.mxu0 %v1649
        %1668 = vmatprep.subr.bf16.mxu0 0
        %1669 = vmatpush1.bf16.msra.mxu0 %v1650
        %1670 = vmatprep.subr.bf16.mxu0 0
        %1671 = vmatpush1.bf16.msra.mxu0 %v1651
        %1672 = vmatprep.subr.bf16.mxu0 0
        %1673 = vmatpush1.bf16.msra.mxu0 %v1652
        %1674 = vmatprep.subr.bf16.mxu0 0
        %1675 = vmatpush1.bf16.msra.mxu0 %v1653
        %1676 = vmatprep.subr.bf16.mxu0 0
        %1677 = vmatpush1.bf16.msra.mxu0 %v1654
        %1678 = vmatprep.subr.bf16.mxu0 0
        %1679 = vmatpush1.bf16.msra.mxu0 %v1655
        %1680 = vmatprep.subr.bf16.mxu0 0
        %1681 = vmatpush1.bf16.msra.mxu0 0
        %1682 = vmatprep.subr.bf16.mxu0 0
        %1683 = vmatpush1.bf16.msra.mxu0 0
        %1684 = vmatprep.subr.bf16.mxu0 0
        %1685 = vmatpush1.bf16.msra.mxu0 0
        %1686 = vmatprep.subr.bf16.mxu0 0
        %1687 = vmatpush1.bf16.msra.mxu0 0
        %1688 = vmatprep.subr.bf16.mxu0 0
        %1689 = vmatpush1.bf16.msra.mxu0 0
        %1690 = vmatprep.subr.bf16.mxu0 0
        %1691 = vmatpush1.bf16.msra.mxu0 0
        %1692 = vmatprep.subr.bf16.mxu0 0
        %1693 = vmatpush1.bf16.msra.mxu0 0
        %1694 = vmatprep.subr.bf16.mxu0 0
        %1695 = vmatpush1.bf16.msra.mxu0 0
        %1696 = vmatprep.mubr.bf16.mxu0 0
        %1697 = vmatmul.mubr.bf16.gmra.mrb[0].mxu0 %v1598
        %v1698 = vpop.f32.mrb[0].mxu0
        %v1699 = vadd.f32 0.0, %v1698
        %v1700 = vpop.f32.mrb[0].mxu0
        %v1701 = vpop.f32.mrb[0].mxu0
        %v1702 = vadd.f32 0.0, %v1701
        %v1703 = vpop.f32.mrb[0].mxu0
        %1704 = vdwg.mxu0
        %v1705 = vadd.f32 %v1592, %v1699
        %v1706 = vadd.f32 %v1595, %v1702
        %v1707 = vlaneseq
        %v1708 = vshrl.u32 %v1707, 7
        %v1709 = vsub.s32 0, %v1708
        %v1710 = vrot.slane %v472, %v1709
        %v1711 = vadd.f32 %v1705, %v1710
        %v1712 = vadd.f32 %v1706, %v1710
        %v1713 = vadd.f32 %v1711, %v1712
        %v1714 = vrot.slane %v1713, 4
        %v1715 = vadd.f32 %v1713, %v1714
        %v1716 = vrot.slane %v1715, 2
        %v1717 = vadd.f32 %v1715, %v1716
        %v1718 = vrot.slane %v1717, 1
        %v1719 = vadd.f32 %v1717, %v1718
        %1720 = vmatprep.subr.mxu0 0.0
        %1721 = vmatpush1.msra.mxu0 %v454
        %1722 = vmatprep.subr.mxu0 0.0
        %1723 = vmatpush1.msra.mxu0 %v455
        %1724 = vmatprep.subr.mxu0 0.0
        %1725 = vmatpush1.msra.mxu0 %v456
        %1726 = vmatprep.subr.mxu0 0.0
        %1727 = vmatpush1.msra.mxu0 %v457
        %1728 = vmatprep.subr.mxu0 0.0
        %1729 = vmatpush1.msra.mxu0 %v458
        %1730 = vmatprep.subr.mxu0 0.0
        %1731 = vmatpush1.msra.mxu0 %v459
        %1732 = vmatprep.subr.mxu0 0.0
        %1733 = vmatpush1.msra.mxu0 %v460
        %1734 = vmatprep.subr.mxu0 0.0
        %1735 = vmatpush1.msra.mxu0 %v461
        %1736 = vmatprep.subr.mxu0 0.0
        %1737 = vmatpush1.msra.mxu0 %v462
        %1738 = vmatprep.subr.mxu0 0.0
        %1739 = vmatpush1.msra.mxu0 %v463
        %1740 = vmatprep.subr.mxu0 0.0
        %1741 = vmatpush1.msra.mxu0 %v464
        %1742 = vmatprep.subr.mxu0 0.0
        %1743 = vmatpush1.msra.mxu0 %v465
        %1744 = vmatprep.subr.mxu0 0.0
        %1745 = vmatpush1.msra.mxu0 %v466
        %1746 = vmatprep.subr.mxu0 0.0
        %1747 = vmatpush1.msra.mxu0 %v467
        %1748 = vmatprep.subr.mxu0 0.0
        %1749 = vmatpush1.msra.mxu0 %v468
        %1750 = vmatprep.subr.mxu0 0.0
        %1751 = vmatpush1.msra.mxu0 %v469
        %1752 = vmatprep.subr.mxu0 0.0
        %1753 = vmatpush1.msra.mxu0 0.0
        %1754 = vmatprep.subr.mxu0 0.0
        %1755 = vmatpush1.msra.mxu0 0.0
        %1756 = vmatprep.subr.mxu0 0.0
        %1757 = vmatpush1.msra.mxu0 0.0
        %1758 = vmatprep.subr.mxu0 0.0
        %1759 = vmatpush1.msra.mxu0 0.0
        %1760 = vmatprep.subr.mxu0 0.0
        %1761 = vmatpush1.msra.mxu0 0.0
        %1762 = vmatprep.subr.mxu0 0.0
        %1763 = vmatpush1.msra.mxu0 0.0
        %1764 = vmatprep.subr.mxu0 0.0
        %1765 = vmatpush1.msra.mxu0 0.0
        %1766 = vmatprep.subr.mxu0 0.0
        %1767 = vmatpush1.msra.mxu0 0.0
        %1768 = vmatprep.subr.mxu0 0.0
        %1769 = vmatpush1.msra.mxu0 0.0
        %1770 = vmatprep.subr.mxu0 0.0
        %1771 = vmatpush1.msra.mxu0 0.0
        %1772 = vmatprep.subr.mxu0 0.0
        %1773 = vmatpush1.msra.mxu0 0.0
        %1774 = vmatprep.subr.mxu0 0.0
        %1775 = vmatpush1.msra.mxu0 0.0
        %1776 = vmatprep.subr.mxu0 0.0
        %1777 = vmatpush1.msra.mxu0 0.0
        %1778 = vmatprep.subr.mxu0 0.0
        %1779 = vmatpush1.msra.mxu0 0.0
        %1780 = vmatprep.subr.mxu0 0.0
        %1781 = vmatpush1.msra.mxu0 0.0
        %1782 = vmatprep.subr.mxu0 0.0
        %1783 = vmatpush1.msra.mxu0 0.0
        %1784 = vmatprep.mubr.f32.mxu0 0.0
        %1785 = vmatmul.mubr.f32.gmra.mrb[0].mxu0 %v1719
        %v1786 = vpop.f32.mrb[0].mxu0
        %v1787 = vadd.f32 0.0, %v1786
        %v1788 = vpop.f32.mrb[0].mxu0
        %1789 = vdwg.mxu0
        %v1790 = vmul.f32 %v1787, 0.00390625
        %v1792 = vsel %vm957, %v1790, 0
        %1794 = vmatprep.subr.mxu0 0.0
        %1795 = vmatpush1.msra.mxu0 %v470
        %1796 = vmatprep.subr.mxu0 0.0
        %1797 = vmatpush1.msra.mxu0 0.0
        %1798 = vmatprep.subr.mxu0 0.0
        %1799 = vmatpush1.msra.mxu0 0.0
        %1800 = vmatprep.subr.mxu0 0.0
        %1801 = vmatpush1.msra.mxu0 0.0
        %1802 = vmatprep.subr.mxu0 0.0
        %1803 = vmatpush1.msra.mxu0 0.0
        %1804 = vmatprep.subr.mxu0 0.0
        %1805 = vmatpush1.msra.mxu0 0.0
        %1806 = vmatprep.subr.mxu0 0.0
        %1807 = vmatpush1.msra.mxu0 0.0
        %1808 = vmatprep.subr.mxu0 0.0
        %1809 = vmatpush1.msra.mxu0 0.0
        %1810 = vmatprep.subr.mxu0 0.0
        %1811 = vmatpush1.msra.mxu0 0.0
        %1812 = vmatprep.subr.mxu0 0.0
        %1813 = vmatpush1.msra.mxu0 0.0
        %1814 = vmatprep.subr.mxu0 0.0
        %1815 = vmatpush1.msra.mxu0 0.0
        %1816 = vmatprep.subr.mxu0 0.0
        %1817 = vmatpush1.msra.mxu0 0.0
        %1818 = vmatprep.subr.mxu0 0.0
        %1819 = vmatpush1.msra.mxu0 0.0
        %1820 = vmatprep.subr.mxu0 0.0
        %1821 = vmatpush1.msra.mxu0 0.0
        %1822 = vmatprep.subr.mxu0 0.0
        %1823 = vmatpush1.msra.mxu0 0.0
        %1824 = vmatprep.subr.mxu0 0.0
        %1825 = vmatpush1.msra.mxu0 0.0
        %1826 = vmatprep.subr.mxu0 0.0
        %1827 = vmatpush1.msra.mxu0 0.0
        %1828 = vmatprep.subr.mxu0 0.0
        %1829 = vmatpush1.msra.mxu0 0.0
        %1830 = vmatprep.subr.mxu0 0.0
        %1831 = vmatpush1.msra.mxu0 0.0
        %1832 = vmatprep.subr.mxu0 0.0
        %1833 = vmatpush1.msra.mxu0 0.0
        %1834 = vmatprep.subr.mxu0 0.0
        %1835 = vmatpush1.msra.mxu0 0.0
        %1836 = vmatprep.subr.mxu0 0.0
        %1837 = vmatpush1.msra.mxu0 0.0
        %1838 = vmatprep.subr.mxu0 0.0
        %1839 = vmatpush1.msra.mxu0 0.0
        %1840 = vmatprep.subr.mxu0 0.0
        %1841 = vmatpush1.msra.mxu0 0.0
        %1842 = vmatprep.subr.mxu0 0.0
        %1843 = vmatpush1.msra.mxu0 0.0
        %1844 = vmatprep.subr.mxu0 0.0
        %1845 = vmatpush1.msra.mxu0 0.0
        %1846 = vmatprep.subr.mxu0 0.0
        %1847 = vmatpush1.msra.mxu0 0.0
        %1848 = vmatprep.subr.mxu0 0.0
        %1849 = vmatpush1.msra.mxu0 0.0
        %1850 = vmatprep.subr.mxu0 0.0
        %1851 = vmatpush1.msra.mxu0 0.0
        %1852 = vmatprep.subr.mxu0 0.0
        %1853 = vmatpush1.msra.mxu0 0.0
        %1854 = vmatprep.subr.mxu0 0.0
        %1855 = vmatpush1.msra.mxu0 0.0
        %1856 = vmatprep.subr.mxu0 0.0
        %1857 = vmatpush1.msra.mxu0 0.0
        %1858 = vmatprep.mubr.f32.mxu0 0.0
        %1859 = vmatmul.mubr.f32.gmra.mrb[0].mxu0 %v1792
        %v1860 = vpop.f32.mrb[0].mxu0
        %v1861 = vadd.f32 0.0, %v1860
        %v1862 = vpop.f32.mrb[0].mxu0
        %1863 = vdwg.mxu0
        %v1864 = vlaneseq
        %v1865 = vshrl.u32 %v1864, 7
        %v1866 = vsub.s32 0, %v1865
        %v1867 = vrot.slane %v1861, %v1866
        %v1868 = vsub.f32 %v1711, %v1867
        %v1869 = vsub.f32 %v1712, %v1867
        %v1870 = vmul.f32 %v1868, %v1868
        %v1871 = vmul.f32 %v1869, %v1869
        %v1872 = vadd.f32 %v1870, %v1871
        %v1873 = vrot.slane %v1872, 4
        %v1874 = vadd.f32 %v1872, %v1873
        %v1875 = vrot.slane %v1874, 2
        %v1876 = vadd.f32 %v1874, %v1875
        %v1877 = vrot.slane %v1876, 1
        %v1878 = vadd.f32 %v1876, %v1877
        %1879 = vmatprep.subr.mxu0 0.0
        %1880 = vmatpush1.msra.mxu0 %v454
        %1881 = vmatprep.subr.mxu0 0.0
        %1882 = vmatpush1.msra.mxu0 %v455
        %1883 = vmatprep.subr.mxu0 0.0
        %1884 = vmatpush1.msra.mxu0 %v456
        %1885 = vmatprep.subr.mxu0 0.0
        %1886 = vmatpush1.msra.mxu0 %v457
        %1887 = vmatprep.subr.mxu0 0.0
        %1888 = vmatpush1.msra.mxu0 %v458
        %1889 = vmatprep.subr.mxu0 0.0
        %1890 = vmatpush1.msra.mxu0 %v459
        %1891 = vmatprep.subr.mxu0 0.0
        %1892 = vmatpush1.msra.mxu0 %v460
        %1893 = vmatprep.subr.mxu0 0.0
        %1894 = vmatpush1.msra.mxu0 %v461
        %1895 = vmatprep.subr.mxu0 0.0
        %1896 = vmatpush1.msra.mxu0 %v462
        %1897 = vmatprep.subr.mxu0 0.0
        %1898 = vmatpush1.msra.mxu0 %v463
        %1899 = vmatprep.subr.mxu0 0.0
        %1900 = vmatpush1.msra.mxu0 %v464
        %1901 = vmatprep.subr.mxu0 0.0
        %1902 = vmatpush1.msra.mxu0 %v465
        %1903 = vmatprep.subr.mxu0 0.0
        %1904 = vmatpush1.msra.mxu0 %v466
        %1905 = vmatprep.subr.mxu0 0.0
        %1906 = vmatpush1.msra.mxu0 %v467
        %1907 = vmatprep.subr.mxu0 0.0
        %1908 = vmatpush1.msra.mxu0 %v468
        %1909 = vmatprep.subr.mxu0 0.0
        %1910 = vmatpush1.msra.mxu0 %v469
        %1911 = vmatprep.subr.mxu0 0.0
        %1912 = vmatpush1.msra.mxu0 0.0
        %1913 = vmatprep.subr.mxu0 0.0
        %1914 = vmatpush1.msra.mxu0 0.0
        %1915 = vmatprep.subr.mxu0 0.0
        %1916 = vmatpush1.msra.mxu0 0.0
        %1917 = vmatprep.subr.mxu0 0.0
        %1918 = vmatpush1.msra.mxu0 0.0
        %1919 = vmatprep.subr.mxu0 0.0
        %1920 = vmatpush1.msra.mxu0 0.0
        %1921 = vmatprep.subr.mxu0 0.0
        %1922 = vmatpush1.msra.mxu0 0.0
        %1923 = vmatprep.subr.mxu0 0.0
        %1924 = vmatpush1.msra.mxu0 0.0
        %1925 = vmatprep.subr.mxu0 0.0
        %1926 = vmatpush1.msra.mxu0 0.0
        %1927 = vmatprep.subr.mxu0 0.0
        %1928 = vmatpush1.msra.mxu0 0.0
        %1929 = vmatprep.subr.mxu0 0.0
        %1930 = vmatpush1.msra.mxu0 0.0
        %1931 = vmatprep.subr.mxu0 0.0
        %1932 = vmatpush1.msra.mxu0 0.0
        %1933 = vmatprep.subr.mxu0 0.0
        %1934 = vmatpush1.msra.mxu0 0.0
        %1935 = vmatprep.subr.mxu0 0.0
        %1936 = vmatpush1.msra.mxu0 0.0
        %1937 = vmatprep.subr.mxu0 0.0
        %1938 = vmatpush1.msra.mxu0 0.0
        %1939 = vmatprep.subr.mxu0 0.0
        %1940 = vmatpush1.msra.mxu0 0.0
        %1941 = vmatprep.subr.mxu0 0.0
        %1942 = vmatpush1.msra.mxu0 0.0
        %1943 = vmatprep.mubr.f32.mxu0 0.0
        %1944 = vmatmul.mubr.f32.gmra.mrb[0].mxu0 %v1878
        %v1945 = vpop.f32.mrb[0].mxu0
        %v1946 = vadd.f32 0.0, %v1945
        %v1947 = vpop.f32.mrb[0].mxu0
        %1948 = vdwg.mxu0
        %v1949 = vmul.f32 %v1946, 0.00390625
        %v1951 = vsel %vm957, %v1949, 0
        %1953 = vmatprep.subr.mxu0 0.0
        %1954 = vmatpush1.msra.mxu0 %v470
        %1955 = vmatprep.subr.mxu0 0.0
        %1956 = vmatpush1.msra.mxu0 0.0
        %1957 = vmatprep.subr.mxu0 0.0
        %1958 = vmatpush1.msra.mxu0 0.0
        %1959 = vmatprep.subr.mxu0 0.0
        %1960 = vmatpush1.msra.mxu0 0.0
        %1961 = vmatprep.subr.mxu0 0.0
        %1962 = vmatpush1.msra.mxu0 0.0
        %1963 = vmatprep.subr.mxu0 0.0
        %1964 = vmatpush1.msra.mxu0 0.0
        %1965 = vmatprep.subr.mxu0 0.0
        %1966 = vmatpush1.msra.mxu0 0.0
        %1967 = vmatprep.subr.mxu0 0.0
        %1968 = vmatpush1.msra.mxu0 0.0
        %1969 = vmatprep.subr.mxu0 0.0
        %1970 = vmatpush1.msra.mxu0 0.0
        %1971 = vmatprep.subr.mxu0 0.0
        %1972 = vmatpush1.msra.mxu0 0.0
        %1973 = vmatprep.subr.mxu0 0.0
        %1974 = vmatpush1.msra.mxu0 0.0
        %1975 = vmatprep.subr.mxu0 0.0
        %1976 = vmatpush1.msra.mxu0 0.0
        %1977 = vmatprep.subr.mxu0 0.0
        %1978 = vmatpush1.msra.mxu0 0.0
        %1979 = vmatprep.subr.mxu0 0.0
        %1980 = vmatpush1.msra.mxu0 0.0
        %1981 = vmatprep.subr.mxu0 0.0
        %1982 = vmatpush1.msra.mxu0 0.0
        %1983 = vmatprep.subr.mxu0 0.0
        %1984 = vmatpush1.msra.mxu0 0.0
        %1985 = vmatprep.subr.mxu0 0.0
        %1986 = vmatpush1.msra.mxu0 0.0
        %1987 = vmatprep.subr.mxu0 0.0
        %1988 = vmatpush1.msra.mxu0 0.0
        %1989 = vmatprep.subr.mxu0 0.0
        %1990 = vmatpush1.msra.mxu0 0.0
        %1991 = vmatprep.subr.mxu0 0.0
        %1992 = vmatpush1.msra.mxu0 0.0
        %1993 = vmatprep.subr.mxu0 0.0
        %1994 = vmatpush1.msra.mxu0 0.0
        %1995 = vmatprep.subr.mxu0 0.0
        %1996 = vmatpush1.msra.mxu0 0.0
        %1997 = vmatprep.subr.mxu0 0.0
        %1998 = vmatpush1.msra.mxu0 0.0
        %1999 = vmatprep.subr.mxu0 0.0
        %2000 = vmatpush1.msra.mxu0 0.0
        %2001 = vmatprep.subr.mxu0 0.0
        %2002 = vmatpush1.msra.mxu0 0.0
        %2003 = vmatprep.subr.mxu0 0.0
        %2004 = vmatpush1.msra.mxu0 0.0
        %2005 = vmatprep.subr.mxu0 0.0
        %2006 = vmatpush1.msra.mxu0 0.0
        %2007 = vmatprep.subr.mxu0 0.0
        %2008 = vmatpush1.msra.mxu0 0.0
        %2009 = vmatprep.subr.mxu0 0.0
        %2010 = vmatpush1.msra.mxu0 0.0
        %2011 = vmatprep.subr.mxu0 0.0
        %2012 = vmatpush1.msra.mxu0 0.0
        %2013 = vmatprep.subr.mxu0 0.0
        %2014 = vmatpush1.msra.mxu0 0.0
        %2015 = vmatprep.subr.mxu0 0.0
        %2016 = vmatpush1.msra.mxu0 0.0
        %2017 = vmatprep.mubr.f32.mxu0 0.0
        %2018 = vmatmul.mubr.f32.gmra.mrb[0].mxu0 %v1951
        %v2019 = vpop.f32.mrb[0].mxu0
        %v2020 = vadd.f32 1e-05, %v2019
        %v2021 = vpop.f32.mrb[0].mxu0
        %2022 = vdwg.mxu0
        %v2023 = vrsqrt.pop %v2020
        %v2024 = vlaneseq
        %v2025 = vshrl.u32 %v2024, 7
        %v2026 = vsub.s32 0, %v2025
        %v2027 = vrot.slane %v2023, %v2026
        %v2028 = vmul.f32 %v1868, %v2027
        %v2029 = vmul.f32 %v1869, %v2027
        %v2030 = vlaneseq
        %v2031 = vshrl.u32 %v2030, 7
        %v2032 = vsub.s32 1, %v2031
        %v2033 = vrot.slane %v472, %v2032
        %v2034 = vmul.f32 %v2028, %v2033
        %v2035 = vmul.f32 %v2029, %v2033
        %v2036 = vlaneseq
        %v2037 = vshrl.u32 %v2036, 7
        %v2038 = vsub.s32 2, %v2037
        %v2039 = vrot.slane %v472, %v2038
        %v2040 = vadd.f32 %v2034, %v2039
        %v2041 = vadd.f32 %v2035, %v2039
        %v2042 = vxor.u32 %v2040, 2147483648
        %v2043 = vxor.u32 %v2041, 2147483648
        %v2044 = vmul.f32 %v2042, 1.442695
        %v2045 = vpow.pop %v2044
        %v2046 = vmul.f32 %v2043, 1.442695
        %v2047 = vpow.pop %v2046
        %v2048 = vadd.f32 %v2045, 1.0
        %v2049 = vadd.f32 %v2047, 1.0
        %v2050 = vrcp.pop %v2048
        %v2051 = vmul.f32 1.0, %v2050
        %v2052 = vrcp.pop %v2049
        %v2053 = vmul.f32 1.0, %v2052
        %v2054 = vmul.f32 %v2040, %v2051
        %v2055 = vmul.f32 %v2041, %v2053
        %v2056 = vld [vmem:[#allocation7] sm:$0xf]
        %v2057 = vld [vmem:[#allocation7 + $0x4] sm:$0xf]
        %v2058 = vld [vmem:[#allocation7 + $0x8] sm:$0xf]
        %v2059 = vld [vmem:[#allocation7 + $0xc] sm:$0xf]
        %v2060 = vld [vmem:[#allocation7 + $0x10] sm:$0xf]
        %v2061 = vld [vmem:[#allocation7 + $0x14] sm:$0xf]
        %v2062 = vld [vmem:[#allocation7 + $0x18] sm:$0xf]
        %v2063 = vld [vmem:[#allocation7 + $0x1c] sm:$0xf]
        %v2064 = vld [vmem:[%s7] sm:$0x1]
        %v2066 = vlaneseq
        %v2067 = vshrl.u32 %v2066, 7
        %v2068 = vsub.s32 0, %v2067
        %v2069 = vrot.slane %v2064, %v2068
        %v2079 = vunpack.c.l.b16 %v2056
        %v2080 = vunpack.c.l.b16 %v2057
        %v2081 = vunpack.c.l.b16 %v2058
        %v2082 = vunpack.c.l.b16 %v2059
        %v2083 = vunpack.c.l.b16 %v2060
        %v2084 = vunpack.c.l.b16 %v2061
        %v2085 = vunpack.c.l.b16 %v2062
        %v2086 = vunpack.c.l.b16 %v2063
        %v2087 = vpack.c.b16 %v2080, %v2079
        %v2088 = vpack.c.b16 %v2082, %v2081
        %v2089 = vpack.c.b16 %v2084, %v2083
        %v2090 = vpack.c.b16 %v2086, %v2085
        %2095 = vmatprep.subr.bf16.mxu0 0
        %2096 = vmatpush1.bf16.msra.mxu0 %v2087
        %2097 = vmatprep.subr.bf16.mxu0 0
        %2098 = vmatpush1.bf16.msra.mxu0 %v2088
        %2099 = vmatprep.subr.bf16.mxu0 0
        %2100 = vmatpush1.bf16.msra.mxu0 %v2089
        %2101 = vmatprep.subr.bf16.mxu0 0
        %2102 = vmatpush1.bf16.msra.mxu0 %v2090
        %2103 = vmatprep.subr.bf16.mxu0 0
        %2104 = vmatpush1.bf16.msra.mxu0 0
        %2105 = vmatprep.subr.bf16.mxu0 0
        %2106 = vmatpush1.bf16.msra.mxu0 0
        %2107 = vmatprep.subr.bf16.mxu0 0
        %2108 = vmatpush1.bf16.msra.mxu0 0
        %2109 = vmatprep.subr.bf16.mxu0 0
        %2110 = vmatpush1.bf16.msra.mxu0 0
        %2111 = vmatprep.subr.bf16.mxu0 0
        %2112 = vmatpush1.bf16.msra.mxu0 0
        %2113 = vmatprep.subr.bf16.mxu0 0
        %2114 = vmatpush1.bf16.msra.mxu0 0
        %2115 = vmatprep.subr.bf16.mxu0 0
        %2116 = vmatpush1.bf16.msra.mxu0 0
        %2117 = vmatprep.subr.bf16.mxu0 0
        %2118 = vmatpush1.bf16.msra.mxu0 0
        %2119 = vmatprep.subr.bf16.mxu0 0
        %2120 = vmatpush1.bf16.msra.mxu0 0
        %2121 = vmatprep.subr.bf16.mxu0 0
        %2122 = vmatpush1.bf16.msra.mxu0 0
        %2123 = vmatprep.subr.bf16.mxu0 0
        %2124 = vmatpush1.bf16.msra.mxu0 0
        %2125 = vmatprep.subr.bf16.mxu0 0
        %2126 = vmatpush1.bf16.msra.mxu0 0
        %2127 = vmatprep.mubr.bf16.mxu0 0
        %2128 = vmatmul.mubr.bf16.gmra.mrb[0].mxu0 %v682
        %v2129 = vpop.f32.mrb[0].mxu0
        %v2130 = vadd.f32 %v2069, %v2129
        %v2131 = vpop.f32.mrb[0].mxu0
        %v2132 = vpop.f32.mrb[0].mxu0
        %v2133 = vadd.f32 %v2069, %v2132
        %v2134 = vpop.f32.mrb[0].mxu0
        %2135 = vdwg.mxu0
        %v2136 = vadd.f32 %v2054, %v2130
        %v2137 = vadd.f32 %v2055, %v2133
        %2138 = vst [vmem:[%s436] sm:$0xff] %v2136
        %2139 = vst [vmem:[%s436 + $0x8] sm:$0xff] %v2137
        %s2140 = sand.u32 %s276, 1
        %s2141 = scalar_lea.sflag [#allocation4], %s2140
        %s2142 = sand.u32 %s276, 1
        %s2143 = smul.addr %s2142, 16
        %s2144 = scalar_lea.vmem [#allocation8], %s2143
        // Predicated region
        $region77: #{tpu_custom_call.1} parent=63 // pred_check
          %p2145 = pneg %p286
        $region78: #{tpu_custom_call.1} parent=63 // pred_check_branch
          %2147 = sbr.rel (%p2145) target = $region80
        $region79: #{tpu_custom_call.1} parent=63 // pred_region
          %s2149 = ssub.s32 256, 256
          %2150 = vsyncadd %s2141, %s2149
          %s2151 = smul.addr %s27, 2
          %s2152 = smul.addr %s2151, 128
          %s2153 = scalar_lea.hbm %s11, %s2152
          %s2154 = sshll.u32 %s2144, 4
          %s2155 = int_to_ptr.vmem [resolvable:$true] %s2154
          %2160 = dma.vmem_to_hbm [thread:$0]  %s2155, 256, %s2153, %s2141, 128, 128, 8
        $region80: #{tpu_custom_call.1} parent=63 // pred_fallthru
          _
      $region64: #{tpu_custom_call.1} parent=5 // pred_fallthru
        _
      %p2161 = scmp.le.s32.totalorder 2, %s22
      // Predicated region
      $region81: #{tpu_custom_call.1} parent=5 // pred_check
        %p2162 = pneg %p2161
      $region82: #{tpu_custom_call.1} parent=5 // pred_check_branch
        %2164 = sbr.rel (%p2162) target = $region84
      $region83: #{tpu_custom_call.1} parent=5 // pred_region
        %s2165 = ssub.s32 %s22, 2
        // Predicated region
        $region85: #{tpu_custom_call.1} parent=83 // pred_check
          %p2166 = pneg %p292
        $region86: #{tpu_custom_call.1} parent=83 // pred_check_branch
          %2168 = sbr.rel (%p2166) target = $region88
        $region87: #{tpu_custom_call.1} parent=83 // pred_region
          %s2169 = sand.u32 %s277, 1
          %s2170 = scalar_lea.sflag [#allocation4], %s2169
          %s2171 = sand.u32 %s277, 1
          %s2172 = smul.addr %s2171, 16
          %s2173 = scalar_lea.vmem [#allocation8], %s2172
          %2174 = dma.done %s2170, 256
        $region88: #{tpu_custom_call.1} parent=83 // pred_fallthru
          _
      $region84: #{tpu_custom_call.1} parent=5 // pred_fallthru
        _
    $region6: #{tpu_custom_call.1} parent=1 // loop_footer
      %s26 = sadd.s32 1, %s22
    $region7: #{tpu_custom_call.1} parent=1 // loop_footer_branch
      %21 = sbr.rel target = $region3
    $region8: #{tpu_custom_call.1} parent=1 // loop_exit
      _
    %2175 = vsyncpa [#allocation3], 1
    %s2176 = scalar_lea.sflag [#allocation3], 1
    %2177 = vsyncpa %s2176, 1
    %2178 = vsyncpa [#allocation6], 1
    %2179 = vsyncpa [#allocation4], 1
    %s2180 = scalar_lea.sflag [#allocation4], 1
    %2181 = vsyncpa %s2180, 1

</llo_original>
